<compile_context>
chip_gen: v5e
topology: v5e:2x2
jax: 0.10.0
libtpu: 0.0.40
codegen_flags: <defaults>
</compile_context>

<pallas_src>
import functools

import numpy as np

import jax
import jax.numpy as jnp
from jax import lax
from jax.experimental import pallas as pl
from jax.experimental.pallas import tpu as pltpu


def _round_up(x, m):
    return ((x + m - 1) // m) * m


def _bilinear_x2_matrix(in_size):
    """(2*in, in) row-interp matrix of F.interpolate(scale_factor=2, mode='bilinear',
    align_corners=False), including PyTorch's clamping of out-of-range source indices."""
    out_size = 2 * in_size
    src = (np.arange(out_size, dtype=np.float64) + 0.5) * 0.5 - 0.5
    src = np.maximum(src, 0.0)
    i0 = np.minimum(np.floor(src).astype(np.int64), in_size - 1)
    i1 = np.minimum(i0 + 1, in_size - 1)
    w1 = (src - i0).astype(np.float32)
    m = np.zeros((out_size, in_size), np.float32)
    m[np.arange(out_size), i0] += 1.0 - w1
    m[np.arange(out_size), i1] += w1
    return m


# ------------------------------- Pallas kernel ---------------------------------
def _gate_deconv_kernel(x_ref, pwt_ref, ph_ref, w_ref, b_ref, o_ref, *,
                        kh, kw, dil, slope, cdtype):
    """Fused bilinear-x2 upsample + zero-pad + conv + gated activation, one batch element.

    x_ref   : (1, Cin, H, W)    original-resolution activation (compute dtype)
    pwt_ref : (W, Wp)           column upsample+pad matrix (transposed); Wp % 128 == 0
    ph_ref  : (Hp_slab, H)      row upsample+pad matrix (+ trailing all-zero slack rows)
    w_ref   : (Cout, T*Cin)     merged act+gate conv weights, (dh, dw, ci)-major
    b_ref   : (Cout, 1)         conv bias (f32)
    o_ref   : (1, half, L)      gated output, (anchor-row, Wp) flattened on lanes
    """
    _, cin, h, w = x_ref.shape
    hp_slab = ph_ref.shape[0]
    wp = pwt_ref.shape[1]
    half, L = o_ref.shape[1], o_ref.shape[2]

    # Bilinear-x2 upsample + conv zero-pad as two MXU matmuls (no HBM intermediates).
    x = x_ref[0].reshape(cin * h, w)                                       # (Cin*H, W)
    t = jnp.dot(x, pwt_ref[...], preferred_element_type=jnp.float32)       # (Cin*H, Wp)
    t3 = t.astype(cdtype).reshape(cin, h, wp)
    ph_b = jnp.broadcast_to(ph_ref[...], (cin, hp_slab, h))                # hoisted, used once
    u = lax.dot_general(ph_b, t3, (((2,), (1,)), ((0,), (0,))),
                        preferred_element_type=jnp.float32)                # (Cin, Hp_slab, Wp)
    uf = u.astype(cdtype).reshape(cin, hp_slab * wp)                       # spatial on lanes

    # In-VMEM im2col.  Only the kw column taps need lane-unaligned shifts; each is computed
    # once and reused by every row tap (row offsets are multiples of Wp, i.e. of 128).
    lcs = (kh - 1) * dil * wp + L
    col = [uf[:, dw * dil: dw * dil + lcs] for dw in range(kw)]
    patches = jnp.concatenate(
        [col[dw][:, dh * dil * wp: dh * dil * wp + L]                      # lane-aligned
         for dh in range(kh) for dw in range(kw)], axis=0)                 # (T*Cin, L)

    # Single merged GEMM for activation + gate halves; f32 accumulation.
    acc = jnp.dot(w_ref[...], patches, preferred_element_type=jnp.float32)  # (Cout, L)
    acc = acc + b_ref[...]

    a, g = acc[:half], acc[half:]                                          # chunk on sublanes
    act = jnp.where(a >= 0, a, slope * a)                                  # LeakyReLU(slope)
    o_ref[0] = (act * jax.nn.sigmoid(g)).astype(o_ref.dtype)


# ------------------------------- wrapper ----------------------------------------
def gate_deconv_forward(x, weight, bias, *, stride=1, padding=0, dilation=1,
                        slope=0.2, compute_dtype=None):
    """GateDeConv.forward: bilinear x2 upsample + Conv2d + chunk/LeakyReLU/sigmoid gating."""
    N, Cin, H, W = x.shape
    Cout, Cin_w, kh, kw = weight.shape
    assert Cin_w == Cin and Cout % 2 == 0, "groups != 1 or odd out_channels unsupported"
    half = Cout // 2
    T = kh * kw
    cdtype = jnp.dtype(compute_dtype) if compute_dtype is not None else x.dtype

    Hup, Wup = 2 * H, 2 * W                       # bilinear x2 output size
    Hp = Hup + 2 * padding                        # zero-padded height seen by the conv
    Wp_real = Wup + 2 * padding                   # zero-padded width seen by the conv
    Wp = _round_up(Wp_real, 128)                  # lane-aligned width (row taps -> aligned)
    H_anchor = Hp - dilation * (kh - 1)           # stride-1 anchor rows
    W_anchor = Wp_real - dilation * (kw - 1)      # valid columns per anchor row
    assert H_anchor > 0 and W_anchor > 0
    H_out = (H_anchor - 1) // stride + 1
    W_out = (W_anchor - 1) // stride + 1
    L = H_anchor * Wp                             # lane-dense flattened output length

    # Trailing all-zero rows so the last column-shifted slice stays in bounds.
    pad_rows = -(-((kw - 1) * dilation) // Wp)
    Hp_slab = Hp + pad_rows
    assert (kh - 1) * dilation * Wp + (kw - 1) * dilation + L <= Hp_slab * Wp

    # Upsample + zero-pad folded into small interpolation matrices (trace-time constants).
    ph = np.zeros((Hp_slab, H), np.float32)
    ph[padding:padding + Hup, :] = _bilinear_x2_matrix(H)
    pwt = np.zeros((W, Wp), np.float32)
    pwt[:, padding:padding + Wup] = _bilinear_x2_matrix(W).T

    # Merged activation+gate weight with (dh, dw, ci)-major contraction order; f32 bias.
    w2d = weight.transpose(0, 2, 3, 1).reshape(Cout, T * Cin).astype(cdtype)
    b2d = bias.reshape(Cout, 1).astype(jnp.float32)

    # Weights/bias use constant index maps (resident); default double-buffering is fine at
    # these sizes -- see TODO above for the large-model tiling plan.
    out_slab = pl.pallas_call(
        functools.partial(_gate_deconv_kernel, kh=kh, kw=kw, dil=dilation,
                          slope=slope, cdtype=cdtype),
        out_shape=jax.ShapeDtypeStruct((N, half, L), x.dtype),
        grid=(N,),
        in_specs=[
            pl.BlockSpec((1, Cin, H, W), lambda n: (n, 0, 0, 0)),
            pl.BlockSpec((W, Wp), lambda n: (0, 0)),
            pl.BlockSpec((Hp_slab, H), lambda n: (0, 0)),
            pl.BlockSpec((Cout, T * Cin), lambda n: (0, 0)),
            pl.BlockSpec((Cout, 1), lambda n: (0, 0)),
        ],
        out_specs=pl.BlockSpec((1, half, L), lambda n: (n, 0, 0)),
        compiler_params=pltpu.CompilerParams(dimension_semantics=("parallel",)),
    )(x.astype(cdtype), jnp.asarray(pwt, cdtype), jnp.asarray(ph, cdtype), w2d, b2d)

    # Slab is already channel-major NCHW order; drop the lane-alignment junk columns.
    out = out_slab.reshape(N, half, H_anchor, Wp)[:, :, :, :W_anchor]
    if stride > 1:
        # TODO(synk): fold stride into the lane mapping so only strided anchors are computed.
        out = out[:, :, ::stride, ::stride]
    return out[:, :, :H_out, :W_out]


# ------------------------------- reference helpers ------------------------------
def upsample_bilinear_x2(x):
    """Gather-based F.interpolate(x, scale_factor=2, mode='bilinear'), used only as an
    independent reference for the fused kernel."""
    N, C, H, W = x.shape

    def src_index(out_size, in_size):
        src = (jnp.arange(out_size, dtype=jnp.float32) + 0.5) * (in_size / out_size) - 0.5
        src = jnp.maximum(src, 0.0)
        i0 = jnp.minimum(jnp.floor(src).astype(jnp.int32), in_size - 1)
        i1 = jnp.minimum(i0 + 1, in_size - 1)
        w1 = src - i0.astype(jnp.float32)
        return i0, i1, 1.0 - w1, w1

    y0, y1, wy0, wy1 = src_index(2 * H, H)
    x0, x1, wx0, wx1 = src_index(2 * W, W)
    r0, r1 = x[:, :, y0, :], x[:, :, y1, :]

    def horiz(r):
        return r[:, :, :, x0] * wx0 + r[:, :, :, x1] * wx1

    return horiz(r0) * wy0[:, None] + horiz(r1) * wy1[:, None]


# ------------------------------- main -------------------------------------------
if __name__ == "__main__":
    key = jax.random.PRNGKey(0)
    k1, k2, k3 = jax.random.split(key, 3)

    # GateDeConv(in_channels=4, out_channels=8, kernel_size=3, stride=1, padding=1):
    # gated output has out_channels // 2 = 4 channels at 2x spatial resolution.
    N, Cin, H, W = 2, 4, 16, 16
    Cout, kh, kw = 8, 3, 3
    stride, padding = 1, 1

    x = jax.random.normal(k1, (N, Cin, H, W), jnp.float32)
    fan_in = Cin * kh * kw
    weight = jax.random.normal(k2, (Cout, Cin, kh, kw), jnp.float32) * jnp.sqrt(2.0 / fan_in)
    bound = 1.0 / jnp.sqrt(float(fan_in))
    bias = jax.random.uniform(k3, (Cout,), jnp.float32, -bound, bound)

    fwd = jax.jit(functools.partial(gate_deconv_forward, stride=stride, padding=padding))
    out = jax.block_until_ready(fwd(x, weight, bias))

    # Independent reference: gather-based bilinear upsample + lax conv + gating.
    x_up = upsample_bilinear_x2(x)
    conv = lax.conv_general_dilated(
        x_up, weight, (stride, stride), ((padding, padding), (padding, padding)),
        dimension_numbers=("NCHW", "OIHW", "NCHW"),
        precision=lax.Precision.HIGHEST) + bias[None, :, None, None]
    xr, yr = conv[:, :Cout // 2], conv[:, Cout // 2:]
    ref = jnp.where(xr >= 0, xr, 0.2 * xr) * jax.nn.sigmoid(yr)

    assert out.shape == (N, Cout // 2, 2 * H, 2 * W), out.shape
    err = float(jnp.max(jnp.abs(out - ref)))
    assert err < 5e-3, f"f32 max abs err {err}"

    # bf16-operand path (v6e/v7x MXU rates); accumulation and epilogue stay f32.
    fwd_bf16 = jax.jit(functools.partial(gate_deconv_forward, stride=stride, padding=padding,
                                         compute_dtype=jnp.bfloat16))
    out_bf16 = jax.block_until_ready(fwd_bf16(x, weight, bias))
    err_bf16 = float(jnp.max(jnp.abs(out_bf16 - ref)))
    assert err_bf16 < 1.5e-1, f"bf16 max abs err {err_bf16}"

    print("KERNEL_OK")
</pallas_src>

<mosaic_0001>
module attributes {stable_mosaic.version = 11 : i64} {
  func.func @_gate_deconv_kernel(%arg0: i32, %arg1: memref<1x4x16x16xf32, #tpu.memory_space<vmem>>, %arg2: memref<16x128xf32, #tpu.memory_space<vmem>>, %arg3: memref<35x16xf32, #tpu.memory_space<vmem>>, %arg4: memref<8x36xf32, #tpu.memory_space<vmem>>, %arg5: memref<8x1xf32, #tpu.memory_space<vmem>>, %arg6: memref<1x4x4096xf32, #tpu.memory_space<vmem>>) attributes {dimension_semantics = [#tpu.dimension_semantics<parallel>], iteration_bounds = array<i64: 2>, scalar_prefetch = 0 : i64, scratch_operands = 0 : i64, tpu.core_type = #tpu.core_type<tc>, window_params = [{transform_indices = @transform_0, window_bounds = array<i64: 1, 4, 16, 16>}, {pipeline_mode = #tpu.pipeline_mode<synchronous>, transform_indices = @transform_1, window_bounds = array<i64: 16, 128>}, {pipeline_mode = #tpu.pipeline_mode<synchronous>, transform_indices = @transform_2, window_bounds = array<i64: 35, 16>}, {pipeline_mode = #tpu.pipeline_mode<synchronous>, transform_indices = @transform_3, window_bounds = array<i64: 8, 36>}, {pipeline_mode = #tpu.pipeline_mode<synchronous>, transform_indices = @transform_4, window_bounds = array<i64: 8, 1>}, {transform_indices = @transform_5, window_bounds = array<i64: 1, 4, 4096>}]} {
    %c0 = arith.constant 0 : index
    %c0_0 = arith.constant 0 : index
    %c0_1 = arith.constant 0 : index
    %c0_2 = arith.constant 0 : index
    %0 = vector.load %arg1[%c0, %c0_0, %c0_1, %c0_2] : memref<1x4x16x16xf32, #tpu.memory_space<vmem>>, vector<1x4x16x16xf32>
    %1 = vector.shape_cast %0 : vector<1x4x16x16xf32> to vector<4x16x16xf32>
    %2 = vector.shape_cast %1 : vector<4x16x16xf32> to vector<64x16xf32>
    %c0_3 = arith.constant 0 : index
    %c0_4 = arith.constant 0 : index
    %3 = vector.load %arg2[%c0_3, %c0_4] : memref<16x128xf32, #tpu.memory_space<vmem>>, vector<16x128xf32>
    %cst = arith.constant dense<0.000000e+00> : vector<64x128xf32>
    %4 = tpu.matmul %2, %3, %cst {dimension_numbers = #tpu.dot_dimension_numbers<[1], [0], [0], [1], [0, 0, 1, 1], [], []>} : vector<64x16xf32>, vector<16x128xf32>, vector<64x128xf32> -> vector<64x128xf32>
    %5 = vector.shape_cast %4 : vector<64x128xf32> to vector<4x16x128xf32>
    %c0_5 = arith.constant 0 : index
    %c0_6 = arith.constant 0 : index
    %6 = vector.load %arg3[%c0_5, %c0_6] : memref<35x16xf32, #tpu.memory_space<vmem>>, vector<35x16xf32>
    %7 = vector.shape_cast %6 : vector<35x16xf32> to vector<1x35x16xf32>
    %8 = vector.broadcast %7 : vector<1x35x16xf32> to vector<4x35x16xf32>
    %cst_7 = arith.constant dense<0.000000e+00> : vector<4x35x128xf32>
    %9 = tpu.matmul %8, %5, %cst_7 {dimension_numbers = #tpu.dot_dimension_numbers<[2], [1], [1], [2], [0, 0, 0, 1, 1, 2], [0], [0]>} : vector<4x35x16xf32>, vector<4x16x128xf32>, vector<4x35x128xf32> -> vector<4x35x128xf32>
    %10 = vector.shape_cast %9 : vector<4x35x128xf32> to vector<4x4480xf32>
    %11 = vector.extract_strided_slice %10 {offsets = [0, 0], sizes = [4, 4352], strides = [1, 1]} : vector<4x4480xf32> to vector<4x4352xf32>
    %12 = vector.extract_strided_slice %10 {offsets = [0, 1], sizes = [4, 4352], strides = [1, 1]} : vector<4x4480xf32> to vector<4x4352xf32>
    %13 = vector.extract_strided_slice %10 {offsets = [0, 2], sizes = [4, 4352], strides = [1, 1]} : vector<4x4480xf32> to vector<4x4352xf32>
    %14 = vector.extract_strided_slice %11 {offsets = [0, 0], sizes = [4, 4096], strides = [1, 1]} : vector<4x4352xf32> to vector<4x4096xf32>
    %15 = vector.extract_strided_slice %12 {offsets = [0, 0], sizes = [4, 4096], strides = [1, 1]} : vector<4x4352xf32> to vector<4x4096xf32>
    %16 = vector.extract_strided_slice %13 {offsets = [0, 0], sizes = [4, 4096], strides = [1, 1]} : vector<4x4352xf32> to vector<4x4096xf32>
    %17 = vector.extract_strided_slice %11 {offsets = [0, 128], sizes = [4, 4096], strides = [1, 1]} : vector<4x4352xf32> to vector<4x4096xf32>
    %18 = vector.extract_strided_slice %12 {offsets = [0, 128], sizes = [4, 4096], strides = [1, 1]} : vector<4x4352xf32> to vector<4x4096xf32>
    %19 = vector.extract_strided_slice %13 {offsets = [0, 128], sizes = [4, 4096], strides = [1, 1]} : vector<4x4352xf32> to vector<4x4096xf32>
    %20 = vector.extract_strided_slice %11 {offsets = [0, 256], sizes = [4, 4096], strides = [1, 1]} : vector<4x4352xf32> to vector<4x4096xf32>
    %21 = vector.extract_strided_slice %12 {offsets = [0, 256], sizes = [4, 4096], strides = [1, 1]} : vector<4x4352xf32> to vector<4x4096xf32>
    %22 = vector.extract_strided_slice %13 {offsets = [0, 256], sizes = [4, 4096], strides = [1, 1]} : vector<4x4352xf32> to vector<4x4096xf32>
    %23 = tpu.concatenate %14, %15, %16, %17, %18, %19, %20, %21, %22 in 0 : vector<4x4096xf32>, vector<4x4096xf32>, vector<4x4096xf32>, vector<4x4096xf32>, vector<4x4096xf32>, vector<4x4096xf32>, vector<4x4096xf32>, vector<4x4096xf32>, vector<4x4096xf32> -> vector<36x4096xf32>
    %c0_8 = arith.constant 0 : index
    %c0_9 = arith.constant 0 : index
    %24 = vector.load %arg4[%c0_8, %c0_9] : memref<8x36xf32, #tpu.memory_space<vmem>>, vector<8x36xf32>
    %cst_10 = arith.constant dense<0.000000e+00> : vector<8x4096xf32>
    %25 = tpu.matmul %24, %23, %cst_10 {dimension_numbers = #tpu.dot_dimension_numbers<[1], [0], [0], [1], [0, 0, 1, 1], [], []>} : vector<8x36xf32>, vector<36x4096xf32>, vector<8x4096xf32> -> vector<8x4096xf32>
    %c0_11 = arith.constant 0 : index
    %c0_12 = arith.constant 0 : index
    %26 = vector.load %arg5[%c0_11, %c0_12] : memref<8x1xf32, #tpu.memory_space<vmem>>, vector<8x1xf32>
    %27 = vector.broadcast %26 : vector<8x1xf32> to vector<8x4096xf32>
    %28 = arith.addf %25, %27 : vector<8x4096xf32>
    %29 = vector.extract_strided_slice %28 {offsets = [0, 0], sizes = [4, 4096], strides = [1, 1]} : vector<8x4096xf32> to vector<4x4096xf32>
    %30 = vector.extract_strided_slice %28 {offsets = [4, 0], sizes = [4, 4096], strides = [1, 1]} : vector<8x4096xf32> to vector<4x4096xf32>
    %cst_13 = arith.constant 0.000000e+00 : f32
    %31 = vector.broadcast %cst_13 : f32 to vector<4x4096xf32>
    %32 = arith.cmpf oge, %29, %31 : vector<4x4096xf32>
    %cst_14 = arith.constant 2.000000e-01 : f32
    %33 = vector.broadcast %cst_14 : f32 to vector<4x4096xf32>
    %34 = arith.mulf %33, %29 : vector<4x4096xf32>
    %35 = arith.select %32, %29, %34 : vector<4x4096xi1>, vector<4x4096xf32>
    %36 = arith.negf %30 : vector<4x4096xf32>
    %37 = math.exp %36 : vector<4x4096xf32>
    %cst_15 = arith.constant 1.000000e+00 : f32
    %38 = vector.broadcast %cst_15 : f32 to vector<4x4096xf32>
    %39 = arith.addf %38, %37 : vector<4x4096xf32>
    %40 = arith.divf %38, %39 : vector<4x4096xf32>
    %41 = arith.mulf %35, %40 : vector<4x4096xf32>
    %c0_16 = arith.constant 0 : index
    %c0_17 = arith.constant 0 : index
    %c0_18 = arith.constant 0 : index
    %42 = vector.load %arg6[%c0_16, %c0_17, %c0_18] : memref<1x4x4096xf32, #tpu.memory_space<vmem>>, vector<1x4x4096xf32>
    %43 = vector.shape_cast %42 : vector<1x4x4096xf32> to vector<4x4096xf32>
    %44 = vector.shape_cast %41 : vector<4x4096xf32> to vector<1x4x4096xf32>
    tpu.vector_store %arg6[%c0_16, %c0_17, %c0_18], %44 {strides = array<i32>} : memref<1x4x4096xf32, #tpu.memory_space<vmem>>, vector<1x4x4096xf32>,
    return
  }
  func.func @transform_0(%arg0: i32) -> (i32, i32, i32, i32) {
    %c0_i32 = arith.constant 0 : i32
    %c0_i32_0 = arith.constant 0 : i32
    %c0_i32_1 = arith.constant 0 : i32
    %c0_i32_2 = arith.constant 0 : i32
    return %arg0, %c0_i32, %c0_i32_0, %c0_i32_1 : i32, i32, i32, i32
  }
  func.func @transform_1(%arg0: i32) -> (i32, i32) {
    %c0_i32 = arith.constant 0 : i32
    %c0_i32_0 = arith.constant 0 : i32
    %c0_i32_1 = arith.constant 0 : i32
    return %c0_i32, %c0_i32_0 : i32, i32
  }
  func.func @transform_2(%arg0: i32) -> (i32, i32) {
    %c0_i32 = arith.constant 0 : i32
    %c0_i32_0 = arith.constant 0 : i32
    %c0_i32_1 = arith.constant 0 : i32
    return %c0_i32, %c0_i32_0 : i32, i32
  }
  func.func @transform_3(%arg0: i32) -> (i32, i32) {
    %c0_i32 = arith.constant 0 : i32
    %c0_i32_0 = arith.constant 0 : i32
    %c0_i32_1 = arith.constant 0 : i32
    return %c0_i32, %c0_i32_0 : i32, i32
  }
  func.func @transform_4(%arg0: i32) -> (i32, i32) {
    %c0_i32 = arith.constant 0 : i32
    %c0_i32_0 = arith.constant 0 : i32
    %c0_i32_1 = arith.constant 0 : i32
    return %c0_i32, %c0_i32_0 : i32, i32
  }
  func.func @transform_5(%arg0: i32) -> (i32, i32, i32) {
    %c0_i32 = arith.constant 0 : i32
    %c0_i32_0 = arith.constant 0 : i32
    %c0_i32_1 = arith.constant 0 : i32
    return %arg0, %c0_i32, %c0_i32_0 : i32, i32, i32
  }
}

</mosaic_0001>

<llo_original>
// kernel: gate_deconv_forward.1
$region0: #{gate_deconv_forward.1}
  #allocation0 [shape = 'u32[]', space=smem, size = 0x4, offset = 0x4, fixed_abs, tag = 'smem constant byte address 0x4 - core index']
  #allocation1 [shape = 'u32[72,128]{1,0:T(1,128)}', space=vmem, size = 0x9000, scoped, tag = 'internal scratch']
  %s0 = inlined_call_operand.vmem [shape: f32[2,4,16,16], index: 0, kind: input, shape index: {}]
  %s1 = inlined_call_operand.hbm [shape: f32[16,128], index: 1, kind: input, shape index: {}]
  %s2 = inlined_call_operand.hbm [shape: f32[35,16], index: 2, kind: input, shape index: {}]
  %s3 = inlined_call_operand.vmem [shape: f32[8,36], index: 3, kind: input, shape index: {}]
  %s4 = inlined_call_operand.vmem [shape: f32[8,1], index: 4, kind: input, shape index: {}]
  %s5 = inlined_call_operand.vmem [shape: f32[2,4,4096], index: 5, kind: output, shape index: {}]
  %s6 = sld [smem:[#allocation0]]
  $region61: #{gate_deconv_forward.1} parent=0
    _
  %s8 = ssub.s32 1, %s6
  %s9 = scalar_select 0, %s8, %s6
  $region1: #{gate_deconv_forward.1} parent=0
    #allocation2 [shape = 'u8[8192]{0}', space=vmem, size = 0x2000, scoped, tag = 'input window, operand 1, single buffered']
    #allocation3 [shape = 's32[2]{0}', space=sflag, size = 0x8, scoped, tag = 'scoped memory for gate_deconv_forward.1']
    #allocation4 [shape = 'u8[20480]{0}', space=vmem, size = 0x5000, scoped, tag = 'input window, operand 2, single buffered']
    #allocation5 [shape = 's32[1]{0}', space=sflag, size = 0x4, scoped, tag = 'scoped memory for gate_deconv_forward.1']
    %10 = vsyncpa [#allocation3], 0
    %11 = vsyncpa [#allocation5], 0
    loop: start=0, step=1, limit=4
    $region2: #{gate_deconv_forward.1} parent=1 // loop_pre_header
      _
    $region3: #{gate_deconv_forward.1} parent=1 // loop_header
      %s13 = sphi 0, %s17
      %p14 = scmp.ge.s32.totalorder %s13, 4
      %s23 = sphi 0, %s25
      %s26 = sphi 0, %s23
      %s27 = sphi 0, %s26
      %s43 = sphi 0, %s27
      %s47 = sphi 0, %s47
      %s49 = sphi 0, %s47
      %s50 = sphi 0, %s49
      %s64 = sphi 0, %s50
      %s68 = sphi 0, %s68
      %s70 = sphi 0, %s68
      %s71 = sphi 0, %s70
      %s85 = sphi 0, %s71
      %s89 = sphi 0, %s89
      %s91 = sphi 0, %s89
      %s92 = sphi 0, %s91
      %s106 = sphi 0, %s92
      %s110 = sphi 0, %s110
      %s112 = sphi 0, %s110
      %s113 = sphi 0, %s112
      %s127 = sphi 0, %s113
      %s133 = sphi 0, %s135
      %s136 = sphi 0, %s133
      %s137 = sphi 0, %s136
      %s153 = sphi 0, %s137
    $region4: #{gate_deconv_forward.1} parent=1 // loop_header_branch
      %16 = sbr.rel (%p14) target = $region8
    $region5: #{gate_deconv_forward.1} parent=1 // loop_body
      %s18 = ssub.s32 %s13, 1
      %s19 = ssub.s32 %s13, 2
      %s20 = sadd.s32 %s13, 1
      %s21 = ssub.s32 %s13, %s20
      %p22 = scmp.eq.s32.totalorder %s21, 0
      %s24 = sadd.s32 %s23, 1
      %s25 = scalar_select %p22, %s23, %s24
      %p28 = pneg %p22
      %p29 = scmp.eq.s32.totalorder %s13, 1
      %p30 = por %p28, %p29
      %p31 = scmp.ne.s32.totalorder %s23, %s26
      %p32 = scmp.eq.s32.totalorder %s13, 0
      %p33 = por %p31, %p32
      %p34 = scmp.ne.s32.totalorder %s23, %s26
      %p35 = scmp.eq.s32.totalorder %s18, 1
      %p36 = por %p34, %p35
      %p37 = scmp.ne.s32.totalorder %s26, %s27
      %p38 = scmp.eq.s32.totalorder %s18, 0
      %p39 = por %p37, %p38
      %p40 = scmp.ne.s32.totalorder %s26, %s27
      %p41 = scmp.eq.s32.totalorder %s19, 1
      %p42 = por %p40, %p41
      %p44 = scmp.ne.s32.totalorder %s27, %s43
      %p45 = scmp.eq.s32.totalorder %s19, 0
      %p46 = por %p44, %p45
      %s48 = sadd.s32 %s47, 1
      %p51 = scmp.eq.s32.totalorder %s13, 1
      %p52 = scmp.ne.s32.totalorder %s47, %s49
      %p53 = scmp.eq.s32.totalorder %s13, 0
      %p54 = por %p52, %p53
      %p55 = scmp.ne.s32.totalorder %s47, %s49
      %p56 = scmp.eq.s32.totalorder %s18, 1
      %p57 = por %p55, %p56
      %p58 = scmp.ne.s32.totalorder %s49, %s50
      %p59 = scmp.eq.s32.totalorder %s18, 0
      %p60 = por %p58, %p59
      %p61 = scmp.ne.s32.totalorder %s49, %s50
      %p62 = scmp.eq.s32.totalorder %s19, 1
      %p63 = por %p61, %p62
      %p65 = scmp.ne.s32.totalorder %s50, %s64
      %p66 = scmp.eq.s32.totalorder %s19, 0
      %p67 = por %p65, %p66
      %s69 = sadd.s32 %s68, 1
      %p72 = scmp.eq.s32.totalorder %s13, 1
      %p73 = scmp.ne.s32.totalorder %s68, %s70
      %p74 = scmp.eq.s32.totalorder %s13, 0
      %p75 = por %p73, %p74
      %p76 = scmp.ne.s32.totalorder %s68, %s70
      %p77 = scmp.eq.s32.totalorder %s18, 1
      %p78 = por %p76, %p77
      %p79 = scmp.ne.s32.totalorder %s70, %s71
      %p80 = scmp.eq.s32.totalorder %s18, 0
      %p81 = por %p79, %p80
      %p82 = scmp.ne.s32.totalorder %s70, %s71
      %p83 = scmp.eq.s32.totalorder %s19, 1
      %p84 = por %p82, %p83
      %p86 = scmp.ne.s32.totalorder %s71, %s85
      %p87 = scmp.eq.s32.totalorder %s19, 0
      %p88 = por %p86, %p87
      %s90 = sadd.s32 %s89, 1
      %p93 = scmp.eq.s32.totalorder %s13, 1
      %p94 = scmp.ne.s32.totalorder %s89, %s91
      %p95 = scmp.eq.s32.totalorder %s13, 0
      %p96 = por %p94, %p95
      %p97 = scmp.ne.s32.totalorder %s89, %s91
      %p98 = scmp.eq.s32.totalorder %s18, 1
      %p99 = por %p97, %p98
      %p100 = scmp.ne.s32.totalorder %s91, %s92
      %p101 = scmp.eq.s32.totalorder %s18, 0
      %p102 = por %p100, %p101
      %p103 = scmp.ne.s32.totalorder %s91, %s92
      %p104 = scmp.eq.s32.totalorder %s19, 1
      %p105 = por %p103, %p104
      %p107 = scmp.ne.s32.totalorder %s92, %s106
      %p108 = scmp.eq.s32.totalorder %s19, 0
      %p109 = por %p107, %p108
      %s111 = sadd.s32 %s110, 1
      %p114 = scmp.eq.s32.totalorder %s13, 1
      %p115 = scmp.ne.s32.totalorder %s110, %s112
      %p116 = scmp.eq.s32.totalorder %s13, 0
      %p117 = por %p115, %p116
      %p118 = scmp.ne.s32.totalorder %s110, %s112
      %p119 = scmp.eq.s32.totalorder %s18, 1
      %p120 = por %p118, %p119
      %p121 = scmp.ne.s32.totalorder %s112, %s113
      %p122 = scmp.eq.s32.totalorder %s18, 0
      %p123 = por %p121, %p122
      %p124 = scmp.ne.s32.totalorder %s112, %s113
      %p125 = scmp.eq.s32.totalorder %s19, 1
      %p126 = por %p124, %p125
      %p128 = scmp.ne.s32.totalorder %s113, %s127
      %p129 = scmp.eq.s32.totalorder %s19, 0
      %p130 = por %p128, %p129
      %s131 = ssub.s32 %s13, %s20
      %p132 = scmp.eq.s32.totalorder %s131, 0
      %s134 = sadd.s32 %s133, 1
      %s135 = scalar_select %p132, %s133, %s134
      %p138 = pneg %p132
      %p139 = scmp.eq.s32.totalorder %s13, 1
      %p140 = por %p138, %p139
      %p141 = scmp.ne.s32.totalorder %s133, %s136
      %p142 = scmp.eq.s32.totalorder %s13, 0
      %p143 = por %p141, %p142
      %p144 = scmp.ne.s32.totalorder %s133, %s136
      %p145 = scmp.eq.s32.totalorder %s18, 1
      %p146 = por %p144, %p145
      %p147 = scmp.ne.s32.totalorder %s136, %s137
      %p148 = scmp.eq.s32.totalorder %s18, 0
      %p149 = por %p147, %p148
      %p150 = scmp.ne.s32.totalorder %s136, %s137
      %p151 = scmp.eq.s32.totalorder %s19, 1
      %p152 = por %p150, %p151
      %p154 = scmp.ne.s32.totalorder %s137, %s153
      %p155 = scmp.eq.s32.totalorder %s19, 0
      %p156 = por %p154, %p155
      %p157 = scmp.le.s32.totalorder 1, %s13
      %p158 = scmp.lt.s32.totalorder %s13, 3
      %p159 = pnand %p157, %p158
      %p160 = pneg %p159
      // Predicated region
      $region9: #{gate_deconv_forward.1} parent=5 // pred_check
        _
      $region10: #{gate_deconv_forward.1} parent=5 // pred_check_branch
        %162 = sbr.rel (%p159) target = $region12
      $region11: #{gate_deconv_forward.1} parent=5 // pred_region
        %s163 = ssub.s32 %s13, 1
        // Predicated region
        $region13: #{gate_deconv_forward.1} parent=11 // pred_check
          %p164 = pneg %p60
        $region14: #{gate_deconv_forward.1} parent=11 // pred_check_branch
          %166 = sbr.rel (%p164) target = $region16
        $region15: #{gate_deconv_forward.1} parent=11 // pred_region
          %168 = vsyncadd [#allocation3], 0
          %s169 = sshll.u32 %s1, 4
          %s170 = int_to_ptr.hbm [resolvable:$true] %s169
          %s171 = sshll.u32 [#allocation2], 4
          %s172 = int_to_ptr.vmem [resolvable:$true] %s171
          %177 = dma.hbm_to_vmem [thread:$0]  %s170, 256, %s172, [#allocation3], 128, 128, 8
        $region16: #{gate_deconv_forward.1} parent=11 // pred_fallthru
          _
        // Predicated region
        $region17: #{gate_deconv_forward.1} parent=11 // pred_check
          %p178 = pneg %p81
        $region18: #{gate_deconv_forward.1} parent=11 // pred_check_branch
          %180 = sbr.rel (%p178) target = $region20
        $region19: #{gate_deconv_forward.1} parent=11 // pred_region
          %182 = vsyncadd [#allocation5], 0
          %s183 = sshll.u32 %s2, 4
          %s184 = int_to_ptr.hbm [resolvable:$true] %s183
          %s185 = sshll.u32 [#allocation4], 4
          %s186 = int_to_ptr.vmem [resolvable:$true] %s185
          %191 = dma.hbm_to_vmem [thread:$0]  %s184, 640, %s186, [#allocation5], 128, 128, 8
        $region20: #{gate_deconv_forward.1} parent=11 // pred_fallthru
          _
        // Predicated region
        $region21: #{gate_deconv_forward.1} parent=11 // pred_check
          %p192 = pneg %p102
        $region22: #{gate_deconv_forward.1} parent=11 // pred_check_branch
          %194 = sbr.rel (%p192) target = $region24
        $region23: #{gate_deconv_forward.1} parent=11 // pred_region
          _
        $region24: #{gate_deconv_forward.1} parent=11 // pred_fallthru
          _
        // Predicated region
        $region25: #{gate_deconv_forward.1} parent=11 // pred_check
          %p195 = pneg %p123
        $region26: #{gate_deconv_forward.1} parent=11 // pred_check_branch
          %197 = sbr.rel (%p195) target = $region28
        $region27: #{gate_deconv_forward.1} parent=11 // pred_region
          _
        $region28: #{gate_deconv_forward.1} parent=11 // pred_fallthru
          _
      $region12: #{gate_deconv_forward.1} parent=5 // pred_fallthru
        _
      %p198 = scmp.lt.s32.totalorder %s13, 2
      // Predicated region
      $region29: #{gate_deconv_forward.1} parent=5 // pred_check
        %p199 = pneg %p198
      $region30: #{gate_deconv_forward.1} parent=5 // pred_check_branch
        %201 = sbr.rel (%p199) target = $region32
      $region31: #{gate_deconv_forward.1} parent=5 // pred_region
        // Predicated region
        $region33: #{gate_deconv_forward.1} parent=31 // pred_check
          %p202 = pneg %p33
        $region34: #{gate_deconv_forward.1} parent=31 // pred_check_branch
          %204 = sbr.rel (%p202) target = $region36
        $region35: #{gate_deconv_forward.1} parent=31 // pred_region
          %p205 = scmp.lt.s32.totalorder %s13, 1
          %s206 = scalar_select %p205, %s13, 1
          %s207 = smul.addr %s206, 8
          %s208 = smul.addr %s207, 8
          %s209 = scalar_lea.vmem %s0, %s208
        $region36: #{gate_deconv_forward.1} parent=31 // pred_fallthru
          _
      $region32: #{gate_deconv_forward.1} parent=5 // pred_fallthru
        _
      %p210 = scmp.le.s32.totalorder 1, %s13
      %p211 = scmp.lt.s32.totalorder %s13, 3
      %p212 = pnand %p210, %p211
      %p213 = pneg %p212
      // Predicated region
      $region37: #{gate_deconv_forward.1} parent=5 // pred_check
        _
      $region38: #{gate_deconv_forward.1} parent=5 // pred_check_branch
        %215 = sbr.rel (%p212) target = $region40
      $region39: #{gate_deconv_forward.1} parent=5 // pred_region
        %s216 = ssub.s32 %s13, 1
        // Predicated region
        $region41: #{gate_deconv_forward.1} parent=39 // pred_check
          %p217 = pneg %p60
        $region42: #{gate_deconv_forward.1} parent=39 // pred_check_branch
          %219 = sbr.rel (%p217) target = $region44
        $region43: #{gate_deconv_forward.1} parent=39 // pred_region
          %221 = dma.done [#allocation3], 256
        $region44: #{gate_deconv_forward.1} parent=39 // pred_fallthru
          _
        // Predicated region
        $region45: #{gate_deconv_forward.1} parent=39 // pred_check
          %p222 = pneg %p81
        $region46: #{gate_deconv_forward.1} parent=39 // pred_check_branch
          %224 = sbr.rel (%p222) target = $region48
        $region47: #{gate_deconv_forward.1} parent=39 // pred_region
          %226 = dma.done [#allocation5], 640
        $region48: #{gate_deconv_forward.1} parent=39 // pred_fallthru
          _
        %p227 = scmp.lt.s32.totalorder %s18, 1
        %s228 = scalar_select %p227, %s18, 1
        %s229 = smul.addr %s228, 8
        %s230 = smul.addr %s229, 8
        %s231 = scalar_lea.vmem %s0, %s230
        %p232 = pneg %p39
        %p233 = pneg %p36
        %p234 = pneg %p60
        %p235 = pneg %p57
        %p236 = pneg %p81
        %p237 = pneg %p78
        %p238 = pneg %p102
        %p239 = pneg %p99
        %p240 = pneg %p123
        %p241 = pneg %p120
        %p242 = pneg %p149
        %p243 = pneg %p146
        %p244 = scmp.lt.s32.totalorder %s18, 1
        %s245 = scalar_select %p244, %s18, 1
        %s246 = smul.addr %s245, 32
        %s247 = smul.addr %s246, 4
        %s248 = scalar_lea.vmem %s5, %s247
        %p249 = scmp.lt.s32.totalorder %s18, 1
        %s250 = scalar_select %p249, %s18, 1
        %s251 = smul.addr %s250, 8
        %s252 = smul.addr %s251, 8
        %s253 = scalar_lea.vmem %s0, %s252
        %p254 = scmp.lt.s32.totalorder %s18, 1
        %s255 = scalar_select %p254, %s18, 1
        %s256 = smul.addr %s255, 32
        %s257 = smul.addr %s256, 4
        %s258 = scalar_lea.vmem %s5, %s257
        %v259 = vld [vmem:[%s253] sm:$0xff]
        %v260 = vld [vmem:[%s253 + $0x8] sm:$0xff]
        %v261 = vld [vmem:[%s253 + $0x10] sm:$0xff]
        %v262 = vld [vmem:[%s253 + $0x18] sm:$0xff]
        %v263 = vld [vmem:[%s253 + $0x20] sm:$0xff]
        %v264 = vld [vmem:[%s253 + $0x28] sm:$0xff]
        %v265 = vld [vmem:[%s253 + $0x30] sm:$0xff]
        %v266 = vld [vmem:[%s253 + $0x38] sm:$0xff]
        %v267 = vld [vmem:[#allocation2] sm:$0xff]
        %v268 = vld [vmem:[#allocation2 + $0x8] sm:$0xff]
        %vm269 = vcmask 130048
        %v271 = vsel %vm269, %v259, 0
        %v274 = vsel %vm269, %v260, 0
        %v277 = vsel %vm269, %v261, 0
        %v280 = vsel %vm269, %v262, 0
        %v283 = vsel %vm269, %v263, 0
        %v286 = vsel %vm269, %v264, 0
        %v289 = vsel %vm269, %v265, 0
        %v292 = vsel %vm269, %v266, 0
        %294 = vmatpush.msra.mxu0 0.0
        %295 = vmatpush.msra.mxu0 0.0
        %296 = vmatpush.msra.mxu0 0.0
        %297 = vmatpush.msra.mxu0 0.0
        %298 = vmatpush.msra.mxu0 0.0
        %299 = vmatpush.msra.mxu0 0.0
        %300 = vmatpush.msra.mxu0 0.0
        %301 = vmatpush.msra.mxu0 0.0
        %302 = vmatpush.msra.mxu0 0.0
        %303 = vmatpush.msra.mxu0 0.0
        %304 = vmatpush.msra.mxu0 0.0
        %305 = vmatpush.msra.mxu0 0.0
        %306 = vmatpush.msra.mxu0 0.0
        %307 = vmatpush.msra.mxu0 0.0
        %308 = vmatpush.msra.mxu0 %v268
        %309 = vmatpush.msra.mxu0 %v267
        %310 = vmatmul.f32.gmra.mxu0 %v271
        %v311 = vpop.f32.mrf.mxu0
        %v312 = vadd.f32 0.0, %v311
        %313 = vmatmul.f32.gmra.mxu0 %v274
        %v314 = vpop.f32.mrf.mxu0
        %v315 = vadd.f32 0.0, %v314
        %316 = vmatmul.f32.gmra.mxu0 %v277
        %v317 = vpop.f32.mrf.mxu0
        %v318 = vadd.f32 0.0, %v317
        %319 = vmatmul.f32.gmra.mxu0 %v280
        %v320 = vpop.f32.mrf.mxu0
        %v321 = vadd.f32 0.0, %v320
        %322 = vmatmul.f32.gmra.mxu0 %v283
        %v323 = vpop.f32.mrf.mxu0
        %v324 = vadd.f32 0.0, %v323
        %325 = vmatmul.f32.gmra.mxu0 %v286
        %v326 = vpop.f32.mrf.mxu0
        %v327 = vadd.f32 0.0, %v326
        %328 = vmatmul.f32.gmra.mxu0 %v289
        %v329 = vpop.f32.mrf.mxu0
        %v330 = vadd.f32 0.0, %v329
        %331 = vmatmul.f32.gmra.mxu0 %v292
        %v332 = vpop.f32.mrf.mxu0
        %v333 = vadd.f32 0.0, %v332
        %334 = vdwg.mxu0
        %v335 = vld [vmem:[#allocation4] sm:$0xff]
        %v336 = vld [vmem:[#allocation4 + $0x8] sm:$0xff]
        %v337 = vld [vmem:[#allocation4 + $0x10] sm:$0xff]
        %v338 = vld [vmem:[#allocation4 + $0x18] sm:$0xff]
        %v339 = vld [vmem:[#allocation4 + $0x20] sm:$0x7]
        %v341 = vsel %vm269, %v335, 0
        %v344 = vsel %vm269, %v336, 0
        %v347 = vsel %vm269, %v337, 0
        %v350 = vsel %vm269, %v338, 0
        %v353 = vsel %vm269, %v339, 0
        %355 = vmatpush.msra.mxu0 0.0
        %356 = vmatpush.msra.mxu0 0.0
        %357 = vmatpush.msra.mxu0 0.0
        %358 = vmatpush.msra.mxu0 0.0
        %359 = vmatpush.msra.mxu0 0.0
        %360 = vmatpush.msra.mxu0 0.0
        %361 = vmatpush.msra.mxu0 0.0
        %362 = vmatpush.msra.mxu0 0.0
        %363 = vmatpush.msra.mxu0 0.0
        %364 = vmatpush.msra.mxu0 0.0
        %365 = vmatpush.msra.mxu0 0.0
        %366 = vmatpush.msra.mxu0 0.0
        %367 = vmatpush.msra.mxu0 0.0
        %368 = vmatpush.msra.mxu0 0.0
        %369 = vmatpush.msra.mxu0 %v315
        %370 = vmatpush.msra.mxu0 %v312
        %371 = vmatmul.f32.gmra.mxu0 %v341
        %v372 = vpop.f32.mrf.mxu0
        %v373 = vadd.f32 0.0, %v372
        %374 = vmatmul.f32.gmra.mxu0 %v344
        %v375 = vpop.f32.mrf.mxu0
        %v376 = vadd.f32 0.0, %v375
        %377 = vmatmul.f32.gmra.mxu0 %v347
        %v378 = vpop.f32.mrf.mxu0
        %v379 = vadd.f32 0.0, %v378
        %380 = vmatmul.f32.gmra.mxu0 %v350
        %v381 = vpop.f32.mrf.mxu0
        %v382 = vadd.f32 0.0, %v381
        %383 = vmatmul.f32.gmra.mxu0 %v353
        %v384 = vpop.f32.mrf.mxu0
        %v385 = vadd.f32 0.0, %v384
        %386 = vdwg.mxu0
        %387 = vmatpush.msra.mxu0 0.0
        %388 = vmatpush.msra.mxu0 0.0
        %389 = vmatpush.msra.mxu0 0.0
        %390 = vmatpush.msra.mxu0 0.0
        %391 = vmatpush.msra.mxu0 0.0
        %392 = vmatpush.msra.mxu0 0.0
        %393 = vmatpush.msra.mxu0 0.0
        %394 = vmatpush.msra.mxu0 0.0
        %395 = vmatpush.msra.mxu0 0.0
        %396 = vmatpush.msra.mxu0 0.0
        %397 = vmatpush.msra.mxu0 0.0
        %398 = vmatpush.msra.mxu0 0.0
        %399 = vmatpush.msra.mxu0 0.0
        %400 = vmatpush.msra.mxu0 0.0
        %401 = vmatpush.msra.mxu0 %v321
        %402 = vmatpush.msra.mxu0 %v318
        %403 = vmatmul.f32.gmra.mxu0 %v341
        %v404 = vpop.f32.mrf.mxu0
        %v405 = vadd.f32 0.0, %v404
        %406 = vmatmul.f32.gmra.mxu0 %v344
        %v407 = vpop.f32.mrf.mxu0
        %v408 = vadd.f32 0.0, %v407
        %409 = vmatmul.f32.gmra.mxu0 %v347
        %v410 = vpop.f32.mrf.mxu0
        %v411 = vadd.f32 0.0, %v410
        %412 = vmatmul.f32.gmra.mxu0 %v350
        %v413 = vpop.f32.mrf.mxu0
        %v414 = vadd.f32 0.0, %v413
        %415 = vmatmul.f32.gmra.mxu0 %v353
        %v416 = vpop.f32.mrf.mxu0
        %v417 = vadd.f32 0.0, %v416
        %418 = vdwg.mxu0
        %419 = vmatpush.msra.mxu0 0.0
        %420 = vmatpush.msra.mxu0 0.0
        %421 = vmatpush.msra.mxu0 0.0
        %422 = vmatpush.msra.mxu0 0.0
        %423 = vmatpush.msra.mxu0 0.0
        %424 = vmatpush.msra.mxu0 0.0
        %425 = vmatpush.msra.mxu0 0.0
        %426 = vmatpush.msra.mxu0 0.0
        %427 = vmatpush.msra.mxu0 0.0
        %428 = vmatpush.msra.mxu0 0.0
        %429 = vmatpush.msra.mxu0 0.0
        %430 = vmatpush.msra.mxu0 0.0
        %431 = vmatpush.msra.mxu0 0.0
        %432 = vmatpush.msra.mxu0 0.0
        %433 = vmatpush.msra.mxu0 %v327
        %434 = vmatpush.msra.mxu0 %v324
        %435 = vmatmul.f32.gmra.mxu0 %v341
        %v436 = vpop.f32.mrf.mxu0
        %v437 = vadd.f32 0.0, %v436
        %438 = vmatmul.f32.gmra.mxu0 %v344
        %v439 = vpop.f32.mrf.mxu0
        %v440 = vadd.f32 0.0, %v439
        %441 = vmatmul.f32.gmra.mxu0 %v347
        %v442 = vpop.f32.mrf.mxu0
        %v443 = vadd.f32 0.0, %v442
        %444 = vmatmul.f32.gmra.mxu0 %v350
        %v445 = vpop.f32.mrf.mxu0
        %v446 = vadd.f32 0.0, %v445
        %447 = vmatmul.f32.gmra.mxu0 %v353
        %v448 = vpop.f32.mrf.mxu0
        %v449 = vadd.f32 0.0, %v448
        %450 = vdwg.mxu0
        %451 = vmatpush.msra.mxu0 0.0
        %452 = vmatpush.msra.mxu0 0.0
        %453 = vmatpush.msra.mxu0 0.0
        %454 = vmatpush.msra.mxu0 0.0
        %455 = vmatpush.msra.mxu0 0.0
        %456 = vmatpush.msra.mxu0 0.0
        %457 = vmatpush.msra.mxu0 0.0
        %458 = vmatpush.msra.mxu0 0.0
        %459 = vmatpush.msra.mxu0 0.0
        %460 = vmatpush.msra.mxu0 0.0
        %461 = vmatpush.msra.mxu0 0.0
        %462 = vmatpush.msra.mxu0 0.0
        %463 = vmatpush.msra.mxu0 0.0
        %464 = vmatpush.msra.mxu0 0.0
        %465 = vmatpush.msra.mxu0 %v333
        %466 = vmatpush.msra.mxu0 %v330
        %467 = vmatmul.f32.gmra.mxu0 %v341
        %v468 = vpop.f32.mrf.mxu0
        %v469 = vadd.f32 0.0, %v468
        %470 = vmatmul.f32.gmra.mxu0 %v344
        %v471 = vpop.f32.mrf.mxu0
        %v472 = vadd.f32 0.0, %v471
        %473 = vmatmul.f32.gmra.mxu0 %v347
        %v474 = vpop.f32.mrf.mxu0
        %v475 = vadd.f32 0.0, %v474
        %476 = vmatmul.f32.gmra.mxu0 %v350
        %v477 = vpop.f32.mrf.mxu0
        %v478 = vadd.f32 0.0, %v477
        %479 = vmatmul.f32.gmra.mxu0 %v353
        %v480 = vpop.f32.mrf.mxu0
        %v481 = vadd.f32 0.0, %v480
        %482 = vdwg.mxu0
        %v483 = vrot.slane %v437, 4
        %vm484 = vcmask 1047556
        %v485 = vsel %vm484, %v483, %v373
        %v486 = vrot.slane %v373, 4
        %v487 = vsel %vm484, %v437, %v486
        %v489 = vunpack.c.l.s4 1983009808
        %v490 = vunpack.c.0.s8 %v489
        %v491 = vperm.slane %v485, %v490
        %v493 = vunpack.c.l.s4 1983009808
        %v494 = vunpack.c.0.s8 %v493
        %v495 = vperm.slane %v487, %v494
        %v496 = vrot.slane %v469, 4
        %v497 = vsel %vm484, %v496, %v405
        %v498 = vrot.slane %v405, 4
        %v499 = vsel %vm484, %v469, %v498
        %v501 = vunpack.c.l.s4 1983009808
        %v502 = vunpack.c.0.s8 %v501
        %v503 = vperm.slane %v497, %v502
        %v505 = vunpack.c.l.s4 1983009808
        %v506 = vunpack.c.0.s8 %v505
        %v507 = vperm.slane %v499, %v506
        %v508 = vrot.slane %v503, 4
        %v509 = vsel %vm484, %v508, %v491
        %v510 = vrot.slane %v491, 4
        %v511 = vsel %vm484, %v503, %v510
        %v513 = vunpack.c.l.s4 1934713408
        %v514 = vunpack.c.0.s8 %v513
        %v515 = vperm.slane %v509, %v514
        %v517 = vunpack.c.l.s4 1934713408
        %v518 = vunpack.c.0.s8 %v517
        %v519 = vperm.slane %v511, %v518
        %v520 = vrot.slane %v507, 4
        %v521 = vsel %vm484, %v520, %v495
        %v522 = vrot.slane %v495, 4
        %v523 = vsel %vm484, %v507, %v522
        %v525 = vunpack.c.l.s4 1934713408
        %v526 = vunpack.c.0.s8 %v525
        %v527 = vperm.slane %v521, %v526
        %v529 = vunpack.c.l.s4 1934713408
        %v530 = vunpack.c.0.s8 %v529
        %v531 = vperm.slane %v523, %v530
        %v532 = vrot.slane %v515, 4
        %v533 = vsel %vm484, 0.0, %v532
        %v534 = vrot.slane %v519, 4
        %v535 = vsel %vm484, 0.0, %v534
        %v536 = vrot.slane %v527, 4
        %v537 = vsel %vm484, 0.0, %v536
        %v538 = vrot.slane %v531, 4
        %v539 = vsel %vm484, 0.0, %v538
        %v540 = vrot.slane %v440, 4
        %v541 = vsel %vm484, %v540, %v376
        %v542 = vrot.slane %v376, 4
        %v543 = vsel %vm484, %v440, %v542
        %v545 = vunpack.c.l.s4 1983009808
        %v546 = vunpack.c.0.s8 %v545
        %v547 = vperm.slane %v541, %v546
        %v549 = vunpack.c.l.s4 1983009808
        %v550 = vunpack.c.0.s8 %v549
        %v551 = vperm.slane %v543, %v550
        %v552 = vrot.slane %v472, 4
        %v553 = vsel %vm484, %v552, %v408
        %v554 = vrot.slane %v408, 4
        %v555 = vsel %vm484, %v472, %v554
        %v557 = vunpack.c.l.s4 1983009808
        %v558 = vunpack.c.0.s8 %v557
        %v559 = vperm.slane %v553, %v558
        %v561 = vunpack.c.l.s4 1983009808
        %v562 = vunpack.c.0.s8 %v561
        %v563 = vperm.slane %v555, %v562
        %v564 = vrot.slane %v559, 4
        %v565 = vsel %vm484, %v564, %v547
        %v566 = vrot.slane %v547, 4
        %v567 = vsel %vm484, %v559, %v566
        %v569 = vunpack.c.l.s4 1934713408
        %v570 = vunpack.c.0.s8 %v569
        %v571 = vperm.slane %v565, %v570
        %v573 = vunpack.c.l.s4 1934713408
        %v574 = vunpack.c.0.s8 %v573
        %v575 = vperm.slane %v567, %v574
        %v576 = vrot.slane %v563, 4
        %v577 = vsel %vm484, %v576, %v551
        %v578 = vrot.slane %v551, 4
        %v579 = vsel %vm484, %v563, %v578
        %v581 = vunpack.c.l.s4 1934713408
        %v582 = vunpack.c.0.s8 %v581
        %v583 = vperm.slane %v577, %v582
        %v585 = vunpack.c.l.s4 1934713408
        %v586 = vunpack.c.0.s8 %v585
        %v587 = vperm.slane %v579, %v586
        %v588 = vrot.slane %v571, 4
        %v589 = vsel %vm484, 0.0, %v588
        %v590 = vrot.slane %v575, 4
        %v591 = vsel %vm484, 0.0, %v590
        %v592 = vrot.slane %v583, 4
        %v593 = vsel %vm484, 0.0, %v592
        %v594 = vrot.slane %v587, 4
        %v595 = vsel %vm484, 0.0, %v594
        %v596 = vrot.slane %v443, 4
        %v597 = vsel %vm484, %v596, %v379
        %v598 = vrot.slane %v379, 4
        %v599 = vsel %vm484, %v443, %v598
        %v601 = vunpack.c.l.s4 1983009808
        %v602 = vunpack.c.0.s8 %v601
        %v603 = vperm.slane %v597, %v602
        %v605 = vunpack.c.l.s4 1983009808
        %v606 = vunpack.c.0.s8 %v605
        %v607 = vperm.slane %v599, %v606
        %v608 = vrot.slane %v475, 4
        %v609 = vsel %vm484, %v608, %v411
        %v610 = vrot.slane %v411, 4
        %v611 = vsel %vm484, %v475, %v610
        %v613 = vunpack.c.l.s4 1983009808
        %v614 = vunpack.c.0.s8 %v613
        %v615 = vperm.slane %v609, %v614
        %v617 = vunpack.c.l.s4 1983009808
        %v618 = vunpack.c.0.s8 %v617
        %v619 = vperm.slane %v611, %v618
        %v620 = vrot.slane %v615, 4
        %v621 = vsel %vm484, %v620, %v603
        %v622 = vrot.slane %v603, 4
        %v623 = vsel %vm484, %v615, %v622
        %v625 = vunpack.c.l.s4 1934713408
        %v626 = vunpack.c.0.s8 %v625
        %v627 = vperm.slane %v621, %v626
        %v629 = vunpack.c.l.s4 1934713408
        %v630 = vunpack.c.0.s8 %v629
        %v631 = vperm.slane %v623, %v630
        %v632 = vrot.slane %v619, 4
        %v633 = vsel %vm484, %v632, %v607
        %v634 = vrot.slane %v607, 4
        %v635 = vsel %vm484, %v619, %v634
        %v637 = vunpack.c.l.s4 1934713408
        %v638 = vunpack.c.0.s8 %v637
        %v639 = vperm.slane %v633, %v638
        %v641 = vunpack.c.l.s4 1934713408
        %v642 = vunpack.c.0.s8 %v641
        %v643 = vperm.slane %v635, %v642
        %v644 = vrot.slane %v627, 4
        %v645 = vsel %vm484, 0.0, %v644
        %v646 = vrot.slane %v631, 4
        %v647 = vsel %vm484, 0.0, %v646
        %v648 = vrot.slane %v639, 4
        %v649 = vsel %vm484, 0.0, %v648
        %v650 = vrot.slane %v643, 4
        %v651 = vsel %vm484, 0.0, %v650
        %v652 = vrot.slane %v446, 4
        %v653 = vsel %vm484, %v652, %v382
        %v654 = vrot.slane %v382, 4
        %v655 = vsel %vm484, %v446, %v654
        %v657 = vunpack.c.l.s4 1983009808
        %v658 = vunpack.c.0.s8 %v657
        %v659 = vperm.slane %v653, %v658
        %v661 = vunpack.c.l.s4 1983009808
        %v662 = vunpack.c.0.s8 %v661
        %v663 = vperm.slane %v655, %v662
        %v664 = vrot.slane %v478, 4
        %v665 = vsel %vm484, %v664, %v414
        %v666 = vrot.slane %v414, 4
        %v667 = vsel %vm484, %v478, %v666
        %v669 = vunpack.c.l.s4 1983009808
        %v670 = vunpack.c.0.s8 %v669
        %v671 = vperm.slane %v665, %v670
        %v673 = vunpack.c.l.s4 1983009808
        %v674 = vunpack.c.0.s8 %v673
        %v675 = vperm.slane %v667, %v674
        %v676 = vrot.slane %v671, 4
        %v677 = vsel %vm484, %v676, %v659
        %v678 = vrot.slane %v659, 4
        %v679 = vsel %vm484, %v671, %v678
        %v681 = vunpack.c.l.s4 1934713408
        %v682 = vunpack.c.0.s8 %v681
        %v683 = vperm.slane %v677, %v682
        %v685 = vunpack.c.l.s4 1934713408
        %v686 = vunpack.c.0.s8 %v685
        %v687 = vperm.slane %v679, %v686
        %v688 = vrot.slane %v675, 4
        %v689 = vsel %vm484, %v688, %v663
        %v690 = vrot.slane %v663, 4
        %v691 = vsel %vm484, %v675, %v690
        %v693 = vunpack.c.l.s4 1934713408
        %v694 = vunpack.c.0.s8 %v693
        %v695 = vperm.slane %v689, %v694
        %v697 = vunpack.c.l.s4 1934713408
        %v698 = vunpack.c.0.s8 %v697
        %v699 = vperm.slane %v691, %v698
        %v700 = vrot.slane %v683, 4
        %v701 = vsel %vm484, 0.0, %v700
        %v702 = vrot.slane %v687, 4
        %v703 = vsel %vm484, 0.0, %v702
        %v704 = vrot.slane %v695, 4
        %v705 = vsel %vm484, 0.0, %v704
        %v706 = vrot.slane %v699, 4
        %v707 = vsel %vm484, 0.0, %v706
        %v708 = vrot.slane %v449, 4
        %v709 = vsel %vm484, %v708, %v385
        %v711 = vunpack.c.l.s4 1983009808
        %v712 = vunpack.c.0.s8 %v711
        %v713 = vperm.slane %v709, %v712
        %v714 = vrot.slane %v481, 4
        %v715 = vsel %vm484, %v714, %v417
        %v717 = vunpack.c.l.s4 1983009808
        %v718 = vunpack.c.0.s8 %v717
        %v719 = vperm.slane %v715, %v718
        %v720 = vrot.slane %v719, 4
        %v721 = vsel %vm484, %v720, %v713
        %v722 = vrot.slane %v713, 4
        %v723 = vsel %vm484, %v719, %v722
        %v725 = vunpack.c.l.s4 1934713408
        %v726 = vunpack.c.0.s8 %v725
        %v727 = vperm.slane %v721, %v726
        %v728 = vrot.slane %v727, 4
        %v729 = vsel %vm484, 0.0, %v728
        %v731 = vunpack.c.l.s4 1934713408
        %v732 = vunpack.c.0.s8 %v731
        %v733 = vperm.slane %v723, %v732
        %v767 = vrot.slane %v515, 4
        %v768 = vrot.slane %v533, 4
        %v769 = vrot.slane %v519, 4
        %v770 = vrot.slane %v535, 4
        %v771 = vrot.slane %v527, 4
        %v772 = vrot.slane %v537, 4
        %v773 = vrot.slane %v531, 4
        %v774 = vrot.slane %v539, 4
        %v775 = vrot.slane %v571, 4
        %v776 = vrot.slane %v589, 4
        %v777 = vrot.slane %v575, 4
        %v778 = vrot.slane %v591, 4
        %v779 = vrot.slane %v583, 4
        %v780 = vrot.slane %v593, 4
        %v781 = vrot.slane %v587, 4
        %v782 = vrot.slane %v595, 4
        %v783 = vrot.slane %v627, 4
        %v784 = vrot.slane %v645, 4
        %v785 = vrot.slane %v631, 4
        %v786 = vrot.slane %v647, 4
        %v787 = vrot.slane %v639, 4
        %v788 = vrot.slane %v649, 4
        %v789 = vrot.slane %v643, 4
        %v790 = vrot.slane %v651, 4
        %v791 = vrot.slane %v683, 4
        %v792 = vrot.slane %v701, 4
        %v793 = vrot.slane %v687, 4
        %v794 = vrot.slane %v703, 4
        %v795 = vrot.slane %v695, 4
        %v796 = vrot.slane %v705, 4
        %v797 = vrot.slane %v699, 4
        %v798 = vrot.slane %v707, 4
        %v799 = vrot.slane %v727, 4
        %800 = vrot.lane.b32.xlu0 %v767, 127
        %v801 = vpop.permute.xlu0 %800
        %802 = vrot.lane.b32.xlu0 %v768, 127
        %v803 = vpop.permute.xlu0 %802
        %804 = vrot.lane.b32.xlu0 %v769, 127
        %v805 = vpop.permute.xlu0 %804
        %806 = vrot.lane.b32.xlu0 %v770, 127
        %v807 = vpop.permute.xlu0 %806
        %808 = vrot.lane.b32.xlu0 %v771, 127
        %v809 = vpop.permute.xlu0 %808
        %810 = vrot.lane.b32.xlu0 %v772, 127
        %v811 = vpop.permute.xlu0 %810
        %812 = vrot.lane.b32.xlu0 %v773, 127
        %v813 = vpop.permute.xlu0 %812
        %814 = vrot.lane.b32.xlu0 %v774, 127
        %v815 = vpop.permute.xlu0 %814
        %816 = vrot.lane.b32.xlu0 %v775, 127
        %v817 = vpop.permute.xlu0 %816
        %818 = vrot.lane.b32.xlu0 %v776, 127
        %v819 = vpop.permute.xlu0 %818
        %820 = vrot.lane.b32.xlu0 %v777, 127
        %v821 = vpop.permute.xlu0 %820
        %822 = vrot.lane.b32.xlu0 %v778, 127
        %v823 = vpop.permute.xlu0 %822
        %824 = vrot.lane.b32.xlu0 %v779, 127
        %v825 = vpop.permute.xlu0 %824
        %826 = vrot.lane.b32.xlu0 %v780, 127
        %v827 = vpop.permute.xlu0 %826
        %828 = vrot.lane.b32.xlu0 %v781, 127
        %v829 = vpop.permute.xlu0 %828
        %830 = vrot.lane.b32.xlu0 %v782, 127
        %v831 = vpop.permute.xlu0 %830
        %832 = vrot.lane.b32.xlu0 %v783, 127
        %v833 = vpop.permute.xlu0 %832
        %834 = vrot.lane.b32.xlu0 %v784, 127
        %v835 = vpop.permute.xlu0 %834
        %836 = vrot.lane.b32.xlu0 %v785, 127
        %v837 = vpop.permute.xlu0 %836
        %838 = vrot.lane.b32.xlu0 %v786, 127
        %v839 = vpop.permute.xlu0 %838
        %840 = vrot.lane.b32.xlu0 %v787, 127
        %v841 = vpop.permute.xlu0 %840
        %842 = vrot.lane.b32.xlu0 %v788, 127
        %v843 = vpop.permute.xlu0 %842
        %844 = vrot.lane.b32.xlu0 %v789, 127
        %v845 = vpop.permute.xlu0 %844
        %846 = vrot.lane.b32.xlu0 %v790, 127
        %v847 = vpop.permute.xlu0 %846
        %848 = vrot.lane.b32.xlu0 %v791, 127
        %v849 = vpop.permute.xlu0 %848
        %850 = vrot.lane.b32.xlu0 %v792, 127
        %v851 = vpop.permute.xlu0 %850
        %852 = vrot.lane.b32.xlu0 %v793, 127
        %v853 = vpop.permute.xlu0 %852
        %854 = vrot.lane.b32.xlu0 %v794, 127
        %v855 = vpop.permute.xlu0 %854
        %856 = vrot.lane.b32.xlu0 %v795, 127
        %v857 = vpop.permute.xlu0 %856
        %858 = vrot.lane.b32.xlu0 %v796, 127
        %v859 = vpop.permute.xlu0 %858
        %860 = vrot.lane.b32.xlu0 %v797, 127
        %v861 = vpop.permute.xlu0 %860
        %862 = vrot.lane.b32.xlu0 %v798, 127
        %v863 = vpop.permute.xlu0 %862
        %864 = vrot.lane.b32.xlu0 %v799, 127
        %v865 = vpop.permute.xlu0 %864
        %vm866 = vcmask 1039360
        %v867 = vsel %vm866, %v801, %v803
        %v868 = vsel %vm866, %v803, %v805
        %v869 = vsel %vm866, %v805, %v807
        %v870 = vsel %vm866, %v807, %v809
        %v871 = vsel %vm866, %v809, %v811
        %v872 = vsel %vm866, %v811, %v813
        %v873 = vsel %vm866, %v813, %v815
        %v874 = vsel %vm866, %v815, %v817
        %v875 = vsel %vm866, %v817, %v819
        %v876 = vsel %vm866, %v819, %v821
        %v877 = vsel %vm866, %v821, %v823
        %v878 = vsel %vm866, %v823, %v825
        %v879 = vsel %vm866, %v825, %v827
        %v880 = vsel %vm866, %v827, %v829
        %v881 = vsel %vm866, %v829, %v831
        %v882 = vsel %vm866, %v831, %v833
        %v883 = vsel %vm866, %v833, %v835
        %v884 = vsel %vm866, %v835, %v837
        %v885 = vsel %vm866, %v837, %v839
        %v886 = vsel %vm866, %v839, %v841
        %v887 = vsel %vm866, %v841, %v843
        %v888 = vsel %vm866, %v843, %v845
        %v889 = vsel %vm866, %v845, %v847
        %v890 = vsel %vm866, %v847, %v849
        %v891 = vsel %vm866, %v849, %v851
        %v892 = vsel %vm866, %v851, %v853
        %v893 = vsel %vm866, %v853, %v855
        %v894 = vsel %vm866, %v855, %v857
        %v895 = vsel %vm866, %v857, %v859
        %v896 = vsel %vm866, %v859, %v861
        %v897 = vsel %vm866, %v861, %v863
        %v898 = vsel %vm866, %v863, %v865
        %931 = vrot.lane.b32.xlu0 %v515, 126
        %v932 = vpop.permute.xlu0 %931
        %933 = vrot.lane.b32.xlu0 %v533, 126
        %v934 = vpop.permute.xlu0 %933
        %935 = vrot.lane.b32.xlu0 %v519, 126
        %v936 = vpop.permute.xlu0 %935
        %937 = vrot.lane.b32.xlu0 %v535, 126
        %v938 = vpop.permute.xlu0 %937
        %939 = vrot.lane.b32.xlu0 %v527, 126
        %v940 = vpop.permute.xlu0 %939
        %941 = vrot.lane.b32.xlu0 %v537, 126
        %v942 = vpop.permute.xlu0 %941
        %943 = vrot.lane.b32.xlu0 %v531, 126
        %v944 = vpop.permute.xlu0 %943
        %945 = vrot.lane.b32.xlu0 %v539, 126
        %v946 = vpop.permute.xlu0 %945
        %947 = vrot.lane.b32.xlu0 %v571, 126
        %v948 = vpop.permute.xlu0 %947
        %949 = vrot.lane.b32.xlu0 %v589, 126
        %v950 = vpop.permute.xlu0 %949
        %951 = vrot.lane.b32.xlu0 %v575, 126
        %v952 = vpop.permute.xlu0 %951
        %953 = vrot.lane.b32.xlu0 %v591, 126
        %v954 = vpop.permute.xlu0 %953
        %955 = vrot.lane.b32.xlu0 %v583, 126
        %v956 = vpop.permute.xlu0 %955
        %957 = vrot.lane.b32.xlu0 %v593, 126
        %v958 = vpop.permute.xlu0 %957
        %959 = vrot.lane.b32.xlu0 %v587, 126
        %v960 = vpop.permute.xlu0 %959
        %961 = vrot.lane.b32.xlu0 %v595, 126
        %v962 = vpop.permute.xlu0 %961
        %963 = vrot.lane.b32.xlu0 %v627, 126
        %v964 = vpop.permute.xlu0 %963
        %965 = vrot.lane.b32.xlu0 %v645, 126
        %v966 = vpop.permute.xlu0 %965
        %967 = vrot.lane.b32.xlu0 %v631, 126
        %v968 = vpop.permute.xlu0 %967
        %969 = vrot.lane.b32.xlu0 %v647, 126
        %v970 = vpop.permute.xlu0 %969
        %971 = vrot.lane.b32.xlu0 %v639, 126
        %v972 = vpop.permute.xlu0 %971
        %973 = vrot.lane.b32.xlu0 %v649, 126
        %v974 = vpop.permute.xlu0 %973
        %975 = vrot.lane.b32.xlu0 %v643, 126
        %v976 = vpop.permute.xlu0 %975
        %977 = vrot.lane.b32.xlu0 %v651, 126
        %v978 = vpop.permute.xlu0 %977
        %979 = vrot.lane.b32.xlu0 %v683, 126
        %v980 = vpop.permute.xlu0 %979
        %981 = vrot.lane.b32.xlu0 %v701, 126
        %v982 = vpop.permute.xlu0 %981
        %983 = vrot.lane.b32.xlu0 %v687, 126
        %v984 = vpop.permute.xlu0 %983
        %985 = vrot.lane.b32.xlu0 %v703, 126
        %v986 = vpop.permute.xlu0 %985
        %987 = vrot.lane.b32.xlu0 %v695, 126
        %v988 = vpop.permute.xlu0 %987
        %989 = vrot.lane.b32.xlu0 %v705, 126
        %v990 = vpop.permute.xlu0 %989
        %991 = vrot.lane.b32.xlu0 %v699, 126
        %v992 = vpop.permute.xlu0 %991
        %993 = vrot.lane.b32.xlu0 %v707, 126
        %v994 = vpop.permute.xlu0 %993
        %995 = vrot.lane.b32.xlu0 %v727, 126
        %v996 = vpop.permute.xlu0 %995
        %vm997 = vcmask 1031168
        %v998 = vsel %vm997, %v932, %v934
        %v999 = vsel %vm997, %v934, %v936
        %v1000 = vsel %vm997, %v936, %v938
        %v1001 = vsel %vm997, %v938, %v940
        %v1002 = vsel %vm997, %v940, %v942
        %v1003 = vsel %vm997, %v942, %v944
        %v1004 = vsel %vm997, %v944, %v946
        %v1005 = vsel %vm997, %v946, %v948
        %v1006 = vsel %vm997, %v948, %v950
        %v1007 = vsel %vm997, %v950, %v952
        %v1008 = vsel %vm997, %v952, %v954
        %v1009 = vsel %vm997, %v954, %v956
        %v1010 = vsel %vm997, %v956, %v958
        %v1011 = vsel %vm997, %v958, %v960
        %v1012 = vsel %vm997, %v960, %v962
        %v1013 = vsel %vm997, %v962, %v964
        %v1014 = vsel %vm997, %v964, %v966
        %v1015 = vsel %vm997, %v966, %v968
        %v1016 = vsel %vm997, %v968, %v970
        %v1017 = vsel %vm997, %v970, %v972
        %v1018 = vsel %vm997, %v972, %v974
        %v1019 = vsel %vm997, %v974, %v976
        %v1020 = vsel %vm997, %v976, %v978
        %v1021 = vsel %vm997, %v978, %v980
        %v1022 = vsel %vm997, %v980, %v982
        %v1023 = vsel %vm997, %v982, %v984
        %v1024 = vsel %vm997, %v984, %v986
        %v1025 = vsel %vm997, %v986, %v988
        %v1026 = vsel %vm997, %v988, %v990
        %v1027 = vsel %vm997, %v990, %v992
        %v1028 = vsel %vm997, %v992, %v994
        %v1029 = vsel %vm997, %v994, %v996
        %1095 = vrot.lane.b32.xlu0 %v533, 127
        %v1096 = vpop.permute.xlu0 %1095
        %1097 = vrot.lane.b32.xlu0 %v519, 127
        %v1098 = vpop.permute.xlu0 %1097
        %1099 = vrot.lane.b32.xlu0 %v535, 127
        %v1100 = vpop.permute.xlu0 %1099
        %1101 = vrot.lane.b32.xlu0 %v527, 127
        %v1102 = vpop.permute.xlu0 %1101
        %1103 = vrot.lane.b32.xlu0 %v537, 127
        %v1104 = vpop.permute.xlu0 %1103
        %1105 = vrot.lane.b32.xlu0 %v531, 127
        %v1106 = vpop.permute.xlu0 %1105
        %1107 = vrot.lane.b32.xlu0 %v539, 127
        %v1108 = vpop.permute.xlu0 %1107
        %1109 = vrot.lane.b32.xlu0 %v571, 127
        %v1110 = vpop.permute.xlu0 %1109
        %1111 = vrot.lane.b32.xlu0 %v589, 127
        %v1112 = vpop.permute.xlu0 %1111
        %1113 = vrot.lane.b32.xlu0 %v575, 127
        %v1114 = vpop.permute.xlu0 %1113
        %1115 = vrot.lane.b32.xlu0 %v591, 127
        %v1116 = vpop.permute.xlu0 %1115
        %1117 = vrot.lane.b32.xlu0 %v583, 127
        %v1118 = vpop.permute.xlu0 %1117
        %1119 = vrot.lane.b32.xlu0 %v593, 127
        %v1120 = vpop.permute.xlu0 %1119
        %1121 = vrot.lane.b32.xlu0 %v587, 127
        %v1122 = vpop.permute.xlu0 %1121
        %1123 = vrot.lane.b32.xlu0 %v595, 127
        %v1124 = vpop.permute.xlu0 %1123
        %1125 = vrot.lane.b32.xlu0 %v627, 127
        %v1126 = vpop.permute.xlu0 %1125
        %1127 = vrot.lane.b32.xlu0 %v645, 127
        %v1128 = vpop.permute.xlu0 %1127
        %1129 = vrot.lane.b32.xlu0 %v631, 127
        %v1130 = vpop.permute.xlu0 %1129
        %1131 = vrot.lane.b32.xlu0 %v647, 127
        %v1132 = vpop.permute.xlu0 %1131
        %1133 = vrot.lane.b32.xlu0 %v639, 127
        %v1134 = vpop.permute.xlu0 %1133
        %1135 = vrot.lane.b32.xlu0 %v649, 127
        %v1136 = vpop.permute.xlu0 %1135
        %1137 = vrot.lane.b32.xlu0 %v643, 127
        %v1138 = vpop.permute.xlu0 %1137
        %1139 = vrot.lane.b32.xlu0 %v651, 127
        %v1140 = vpop.permute.xlu0 %1139
        %1141 = vrot.lane.b32.xlu0 %v683, 127
        %v1142 = vpop.permute.xlu0 %1141
        %1143 = vrot.lane.b32.xlu0 %v701, 127
        %v1144 = vpop.permute.xlu0 %1143
        %1145 = vrot.lane.b32.xlu0 %v687, 127
        %v1146 = vpop.permute.xlu0 %1145
        %1147 = vrot.lane.b32.xlu0 %v703, 127
        %v1148 = vpop.permute.xlu0 %1147
        %1149 = vrot.lane.b32.xlu0 %v695, 127
        %v1150 = vpop.permute.xlu0 %1149
        %1151 = vrot.lane.b32.xlu0 %v705, 127
        %v1152 = vpop.permute.xlu0 %1151
        %1153 = vrot.lane.b32.xlu0 %v699, 127
        %v1154 = vpop.permute.xlu0 %1153
        %1155 = vrot.lane.b32.xlu0 %v707, 127
        %v1156 = vpop.permute.xlu0 %1155
        %1157 = vrot.lane.b32.xlu0 %v727, 127
        %v1158 = vpop.permute.xlu0 %1157
        %1159 = vrot.lane.b32.xlu0 %v729, 127
        %v1160 = vpop.permute.xlu0 %1159
        %v1161 = vsel %vm866, %v1096, %v1098
        %v1162 = vsel %vm866, %v1098, %v1100
        %v1163 = vsel %vm866, %v1100, %v1102
        %v1164 = vsel %vm866, %v1102, %v1104
        %v1165 = vsel %vm866, %v1104, %v1106
        %v1166 = vsel %vm866, %v1106, %v1108
        %v1167 = vsel %vm866, %v1108, %v1110
        %v1168 = vsel %vm866, %v1110, %v1112
        %v1169 = vsel %vm866, %v1112, %v1114
        %v1170 = vsel %vm866, %v1114, %v1116
        %v1171 = vsel %vm866, %v1116, %v1118
        %v1172 = vsel %vm866, %v1118, %v1120
        %v1173 = vsel %vm866, %v1120, %v1122
        %v1174 = vsel %vm866, %v1122, %v1124
        %v1175 = vsel %vm866, %v1124, %v1126
        %v1176 = vsel %vm866, %v1126, %v1128
        %v1177 = vsel %vm866, %v1128, %v1130
        %v1178 = vsel %vm866, %v1130, %v1132
        %v1179 = vsel %vm866, %v1132, %v1134
        %v1180 = vsel %vm866, %v1134, %v1136
        %v1181 = vsel %vm866, %v1136, %v1138
        %v1182 = vsel %vm866, %v1138, %v1140
        %v1183 = vsel %vm866, %v1140, %v1142
        %v1184 = vsel %vm866, %v1142, %v1144
        %v1185 = vsel %vm866, %v1144, %v1146
        %v1186 = vsel %vm866, %v1146, %v1148
        %v1187 = vsel %vm866, %v1148, %v1150
        %v1188 = vsel %vm866, %v1150, %v1152
        %v1189 = vsel %vm866, %v1152, %v1154
        %v1190 = vsel %vm866, %v1154, %v1156
        %v1191 = vsel %vm866, %v1156, %v1158
        %v1192 = vsel %vm866, %v1158, %v1160
        %v1225 = vrot.slane %v729, 4
        %1226 = vrot.lane.b32.xlu0 %v768, 126
        %v1227 = vpop.permute.xlu0 %1226
        %1228 = vrot.lane.b32.xlu0 %v769, 126
        %v1229 = vpop.permute.xlu0 %1228
        %1230 = vrot.lane.b32.xlu0 %v770, 126
        %v1231 = vpop.permute.xlu0 %1230
        %1232 = vrot.lane.b32.xlu0 %v771, 126
        %v1233 = vpop.permute.xlu0 %1232
        %1234 = vrot.lane.b32.xlu0 %v772, 126
        %v1235 = vpop.permute.xlu0 %1234
        %1236 = vrot.lane.b32.xlu0 %v773, 126
        %v1237 = vpop.permute.xlu0 %1236
        %1238 = vrot.lane.b32.xlu0 %v774, 126
        %v1239 = vpop.permute.xlu0 %1238
        %1240 = vrot.lane.b32.xlu0 %v775, 126
        %v1241 = vpop.permute.xlu0 %1240
        %1242 = vrot.lane.b32.xlu0 %v776, 126
        %v1243 = vpop.permute.xlu0 %1242
        %1244 = vrot.lane.b32.xlu0 %v777, 126
        %v1245 = vpop.permute.xlu0 %1244
        %1246 = vrot.lane.b32.xlu0 %v778, 126
        %v1247 = vpop.permute.xlu0 %1246
        %1248 = vrot.lane.b32.xlu0 %v779, 126
        %v1249 = vpop.permute.xlu0 %1248
        %1250 = vrot.lane.b32.xlu0 %v780, 126
        %v1251 = vpop.permute.xlu0 %1250
        %1252 = vrot.lane.b32.xlu0 %v781, 126
        %v1253 = vpop.permute.xlu0 %1252
        %1254 = vrot.lane.b32.xlu0 %v782, 126
        %v1255 = vpop.permute.xlu0 %1254
        %1256 = vrot.lane.b32.xlu0 %v783, 126
        %v1257 = vpop.permute.xlu0 %1256
        %1258 = vrot.lane.b32.xlu0 %v784, 126
        %v1259 = vpop.permute.xlu0 %1258
        %1260 = vrot.lane.b32.xlu0 %v785, 126
        %v1261 = vpop.permute.xlu0 %1260
        %1262 = vrot.lane.b32.xlu0 %v786, 126
        %v1263 = vpop.permute.xlu0 %1262
        %1264 = vrot.lane.b32.xlu0 %v787, 126
        %v1265 = vpop.permute.xlu0 %1264
        %1266 = vrot.lane.b32.xlu0 %v788, 126
        %v1267 = vpop.permute.xlu0 %1266
        %1268 = vrot.lane.b32.xlu0 %v789, 126
        %v1269 = vpop.permute.xlu0 %1268
        %1270 = vrot.lane.b32.xlu0 %v790, 126
        %v1271 = vpop.permute.xlu0 %1270
        %1272 = vrot.lane.b32.xlu0 %v791, 126
        %v1273 = vpop.permute.xlu0 %1272
        %1274 = vrot.lane.b32.xlu0 %v792, 126
        %v1275 = vpop.permute.xlu0 %1274
        %1276 = vrot.lane.b32.xlu0 %v793, 126
        %v1277 = vpop.permute.xlu0 %1276
        %1278 = vrot.lane.b32.xlu0 %v794, 126
        %v1279 = vpop.permute.xlu0 %1278
        %1280 = vrot.lane.b32.xlu0 %v795, 126
        %v1281 = vpop.permute.xlu0 %1280
        %1282 = vrot.lane.b32.xlu0 %v796, 126
        %v1283 = vpop.permute.xlu0 %1282
        %1284 = vrot.lane.b32.xlu0 %v797, 126
        %v1285 = vpop.permute.xlu0 %1284
        %1286 = vrot.lane.b32.xlu0 %v798, 126
        %v1287 = vpop.permute.xlu0 %1286
        %1288 = vrot.lane.b32.xlu0 %v799, 126
        %v1289 = vpop.permute.xlu0 %1288
        %1290 = vrot.lane.b32.xlu0 %v1225, 126
        %v1291 = vpop.permute.xlu0 %1290
        %v1292 = vsel %vm997, %v1227, %v1229
        %v1293 = vsel %vm997, %v1229, %v1231
        %v1294 = vsel %vm997, %v1231, %v1233
        %v1295 = vsel %vm997, %v1233, %v1235
        %v1296 = vsel %vm997, %v1235, %v1237
        %v1297 = vsel %vm997, %v1237, %v1239
        %v1298 = vsel %vm997, %v1239, %v1241
        %v1299 = vsel %vm997, %v1241, %v1243
        %v1300 = vsel %vm997, %v1243, %v1245
        %v1301 = vsel %vm997, %v1245, %v1247
        %v1302 = vsel %vm997, %v1247, %v1249
        %v1303 = vsel %vm997, %v1249, %v1251
        %v1304 = vsel %vm997, %v1251, %v1253
        %v1305 = vsel %vm997, %v1253, %v1255
        %v1306 = vsel %vm997, %v1255, %v1257
        %v1307 = vsel %vm997, %v1257, %v1259
        %v1308 = vsel %vm997, %v1259, %v1261
        %v1309 = vsel %vm997, %v1261, %v1263
        %v1310 = vsel %vm997, %v1263, %v1265
        %v1311 = vsel %vm997, %v1265, %v1267
        %v1312 = vsel %vm997, %v1267, %v1269
        %v1313 = vsel %vm997, %v1269, %v1271
        %v1314 = vsel %vm997, %v1271, %v1273
        %v1315 = vsel %vm997, %v1273, %v1275
        %v1316 = vsel %vm997, %v1275, %v1277
        %v1317 = vsel %vm997, %v1277, %v1279
        %v1318 = vsel %vm997, %v1279, %v1281
        %v1319 = vsel %vm997, %v1281, %v1283
        %v1320 = vsel %vm997, %v1283, %v1285
        %v1321 = vsel %vm997, %v1285, %v1287
        %v1322 = vsel %vm997, %v1287, %v1289
        %v1323 = vsel %vm997, %v1289, %v1291
        %v1357 = vrot.slane %v733, 4
        %1358 = vrot.lane.b32.xlu0 %v1225, 127
        %v1359 = vpop.permute.xlu0 %1358
        %1360 = vrot.lane.b32.xlu0 %v1357, 127
        %v1361 = vpop.permute.xlu0 %1360
        %v1362 = vsel %vm866, %v865, %v1359
        %v1363 = vsel %vm866, %v1359, %v1361
        %1366 = vrot.lane.b32.xlu0 %v729, 126
        %v1367 = vpop.permute.xlu0 %1366
        %1368 = vrot.lane.b32.xlu0 %v733, 126
        %v1369 = vpop.permute.xlu0 %1368
        %v1370 = vsel %vm997, %v996, %v1367
        %v1371 = vsel %vm997, %v1367, %v1369
        %vm1372 = vcmask 1043456
        %v1373 = vsel %vm1372, %v515, %v867
        %v1374 = vsel %vm1372, %v533, %v868
        %v1375 = vsel %vm1372, %v519, %v869
        %v1376 = vsel %vm1372, %v535, %v870
        %v1377 = vsel %vm1372, %v527, %v871
        %v1378 = vsel %vm1372, %v537, %v872
        %v1379 = vsel %vm1372, %v531, %v873
        %v1380 = vsel %vm1372, %v539, %v874
        %v1381 = vsel %vm1372, %v571, %v875
        %v1382 = vsel %vm1372, %v589, %v876
        %v1383 = vsel %vm1372, %v575, %v877
        %v1384 = vsel %vm1372, %v591, %v878
        %v1385 = vsel %vm1372, %v583, %v879
        %v1386 = vsel %vm1372, %v593, %v880
        %v1387 = vsel %vm1372, %v587, %v881
        %v1388 = vsel %vm1372, %v595, %v882
        %v1389 = vsel %vm1372, %v627, %v883
        %v1390 = vsel %vm1372, %v645, %v884
        %v1391 = vsel %vm1372, %v631, %v885
        %v1392 = vsel %vm1372, %v647, %v886
        %v1393 = vsel %vm1372, %v639, %v887
        %v1394 = vsel %vm1372, %v649, %v888
        %v1395 = vsel %vm1372, %v643, %v889
        %v1396 = vsel %vm1372, %v651, %v890
        %v1397 = vsel %vm1372, %v683, %v891
        %v1398 = vsel %vm1372, %v701, %v892
        %v1399 = vsel %vm1372, %v687, %v893
        %v1400 = vsel %vm1372, %v703, %v894
        %v1401 = vsel %vm1372, %v695, %v895
        %v1402 = vsel %vm1372, %v705, %v896
        %v1403 = vsel %vm1372, %v699, %v897
        %v1404 = vsel %vm1372, %v707, %v898
        %v1405 = vsel %vm1372, %v998, %v768
        %v1406 = vsel %vm1372, %v999, %v769
        %v1407 = vsel %vm1372, %v1000, %v770
        %v1408 = vsel %vm1372, %v1001, %v771
        %v1409 = vsel %vm1372, %v1002, %v772
        %v1410 = vsel %vm1372, %v1003, %v773
        %v1411 = vsel %vm1372, %v1004, %v774
        %v1412 = vsel %vm1372, %v1005, %v775
        %v1413 = vsel %vm1372, %v1006, %v776
        %v1414 = vsel %vm1372, %v1007, %v777
        %v1415 = vsel %vm1372, %v1008, %v778
        %v1416 = vsel %vm1372, %v1009, %v779
        %v1417 = vsel %vm1372, %v1010, %v780
        %v1418 = vsel %vm1372, %v1011, %v781
        %v1419 = vsel %vm1372, %v1012, %v782
        %v1420 = vsel %vm1372, %v1013, %v783
        %v1421 = vsel %vm1372, %v1014, %v784
        %v1422 = vsel %vm1372, %v1015, %v785
        %v1423 = vsel %vm1372, %v1016, %v786
        %v1424 = vsel %vm1372, %v1017, %v787
        %v1425 = vsel %vm1372, %v1018, %v788
        %v1426 = vsel %vm1372, %v1019, %v789
        %v1427 = vsel %vm1372, %v1020, %v790
        %v1428 = vsel %vm1372, %v1021, %v791
        %v1429 = vsel %vm1372, %v1022, %v792
        %v1430 = vsel %vm1372, %v1023, %v793
        %v1431 = vsel %vm1372, %v1024, %v794
        %v1432 = vsel %vm1372, %v1025, %v795
        %v1433 = vsel %vm1372, %v1026, %v796
        %v1434 = vsel %vm1372, %v1027, %v797
        %v1435 = vsel %vm1372, %v1028, %v798
        %v1436 = vsel %vm1372, %v1029, %v799
        %v1437 = vsel %vm1372, %v1161, %v1292
        %v1438 = vsel %vm1372, %v1162, %v1293
        %v1439 = vsel %vm1372, %v1163, %v1294
        %v1440 = vsel %vm1372, %v1164, %v1295
        %v1441 = vsel %vm1372, %v1165, %v1296
        %v1442 = vsel %vm1372, %v1166, %v1297
        %v1443 = vsel %vm1372, %v1167, %v1298
        %v1444 = vsel %vm1372, %v1168, %v1299
        %v1445 = vsel %vm1372, %v1169, %v1300
        %v1446 = vsel %vm1372, %v1170, %v1301
        %v1447 = vsel %vm1372, %v1171, %v1302
        %v1448 = vsel %vm1372, %v1172, %v1303
        %v1449 = vsel %vm1372, %v1173, %v1304
        %v1450 = vsel %vm1372, %v1174, %v1305
        %v1451 = vsel %vm1372, %v1175, %v1306
        %v1452 = vsel %vm1372, %v1176, %v1307
        %v1453 = vsel %vm1372, %v1177, %v1308
        %v1454 = vsel %vm1372, %v1178, %v1309
        %v1455 = vsel %vm1372, %v1179, %v1310
        %v1456 = vsel %vm1372, %v1180, %v1311
        %v1457 = vsel %vm1372, %v1181, %v1312
        %v1458 = vsel %vm1372, %v1182, %v1313
        %v1459 = vsel %vm1372, %v1183, %v1314
        %v1460 = vsel %vm1372, %v1184, %v1315
        %v1461 = vsel %vm1372, %v1185, %v1316
        %v1462 = vsel %vm1372, %v1186, %v1317
        %v1463 = vsel %vm1372, %v1187, %v1318
        %v1464 = vsel %vm1372, %v1188, %v1319
        %v1465 = vsel %vm1372, %v1189, %v1320
        %v1466 = vsel %vm1372, %v1190, %v1321
        %v1467 = vsel %vm1372, %v1191, %v1322
        %v1468 = vsel %vm1372, %v1192, %v1323
        %v1469 = vsel %vm1372, %v727, %v1362
        %v1470 = vsel %vm1372, %v729, %v1363
        %v1471 = vld [vmem:[%s3] sm:$0xff]
        %v1472 = vld [vmem:[%s4] sm:$0xff]
        %1474 = vset.pattern.permute.xlu0 0
        %1475 = vperm.xlu0 %1474, %v1472
        %v1476 = vpop.permute.xlu0 %1475
        %vm1478 = vcmask 293888
        %v1480 = vsel %vm1478, %v1471, 0
        %v1482 = vsel %vm1372, %v1000, 0
        %v1484 = vsel %vm1372, %v1001, 0
        %v1486 = vsel %vm1372, %v1002, 0
        %v1488 = vsel %vm1372, %v1003, 0
        %v1490 = vsel %vm1372, %v1004, 0
        %v1492 = vsel %vm1372, %v1005, 0
        %v1494 = vsel %vm1372, %v1006, 0
        %v1496 = vsel %vm1372, %v1007, 0
        %v1498 = vsel %vm1372, %v1008, 0
        %v1500 = vsel %vm1372, %v1009, 0
        %v1502 = vsel %vm1372, %v1010, 0
        %v1504 = vsel %vm1372, %v1011, 0
        %v1506 = vsel %vm1372, %v1012, 0
        %v1508 = vsel %vm1372, %v1013, 0
        %v1510 = vsel %vm1372, %v1014, 0
        %v1512 = vsel %vm1372, %v1015, 0
        %v1514 = vsel %vm1372, %v1016, 0
        %v1516 = vsel %vm1372, %v1017, 0
        %v1518 = vsel %vm1372, %v1018, 0
        %v1520 = vsel %vm1372, %v1019, 0
        %v1522 = vsel %vm1372, %v1020, 0
        %v1524 = vsel %vm1372, %v1021, 0
        %v1526 = vsel %vm1372, %v1022, 0
        %v1528 = vsel %vm1372, %v1023, 0
        %v1530 = vsel %vm1372, %v1024, 0
        %v1532 = vsel %vm1372, %v1025, 0
        %v1534 = vsel %vm1372, %v1026, 0
        %v1536 = vsel %vm1372, %v1027, 0
        %v1538 = vsel %vm1372, %v1028, 0
        %v1540 = vsel %vm1372, %v1029, 0
        %v1542 = vsel %vm1372, %v1370, 0
        %v1544 = vsel %vm1372, %v1371, 0
        %1546 = vmatpush.msra.mxu0 0.0
        %1547 = vmatpush.msra.mxu0 0.0
        %1548 = vmatpush.msra.mxu0 0.0
        %1549 = vmatpush.msra.mxu0 0.0
        %1550 = vmatpush.msra.mxu0 0.0
        %1551 = vmatpush.msra.mxu0 0.0
        %1552 = vmatpush.msra.mxu0 0.0
        %1553 = vmatpush.msra.mxu0 0.0
        %1554 = vmatpush.msra.mxu0 0.0
        %1555 = vmatpush.msra.mxu0 0.0
        %1556 = vmatpush.msra.mxu0 0.0
        %1557 = vmatpush.msra.mxu0 %v1482
        %1558 = vmatpush.msra.mxu0 %v1375
        %1559 = vmatpush.msra.mxu0 %v1437
        %1560 = vmatpush.msra.mxu0 %v1405
        %1561 = vmatpush.msra.mxu0 %v1373
        %1562 = vmatmul.f32.gmra.mxu0 %v1480
        %v1563 = vpop.f32.mrf.mxu0
        %v1564 = vadd.f32 %v1476, %v1563
        %1565 = vdwg.mxu0
        %1566 = vmatpush.msra.mxu0 0.0
        %1567 = vmatpush.msra.mxu0 0.0
        %1568 = vmatpush.msra.mxu0 0.0
        %1569 = vmatpush.msra.mxu0 0.0
        %1570 = vmatpush.msra.mxu0 0.0
        %1571 = vmatpush.msra.mxu0 0.0
        %1572 = vmatpush.msra.mxu0 0.0
        %1573 = vmatpush.msra.mxu0 0.0
        %1574 = vmatpush.msra.mxu0 0.0
        %1575 = vmatpush.msra.mxu0 0.0
        %1576 = vmatpush.msra.mxu0 0.0
        %1577 = vmatpush.msra.mxu0 %v1484
        %1578 = vmatpush.msra.mxu0 %v1376
        %1579 = vmatpush.msra.mxu0 %v1438
        %1580 = vmatpush.msra.mxu0 %v1406
        %1581 = vmatpush.msra.mxu0 %v1374
        %1582 = vmatmul.f32.gmra.mxu0 %v1480
        %v1583 = vpop.f32.mrf.mxu0
        %v1584 = vadd.f32 %v1476, %v1583
        %1585 = vdwg.mxu0
        %1586 = vmatpush.msra.mxu0 0.0
        %1587 = vmatpush.msra.mxu0 0.0
        %1588 = vmatpush.msra.mxu0 0.0
        %1589 = vmatpush.msra.mxu0 0.0
        %1590 = vmatpush.msra.mxu0 0.0
        %1591 = vmatpush.msra.mxu0 0.0
        %1592 = vmatpush.msra.mxu0 0.0
        %1593 = vmatpush.msra.mxu0 0.0
        %1594 = vmatpush.msra.mxu0 0.0
        %1595 = vmatpush.msra.mxu0 0.0
        %1596 = vmatpush.msra.mxu0 0.0
        %1597 = vmatpush.msra.mxu0 %v1486
        %1598 = vmatpush.msra.mxu0 %v1377
        %1599 = vmatpush.msra.mxu0 %v1439
        %1600 = vmatpush.msra.mxu0 %v1407
        %1601 = vmatpush.msra.mxu0 %v1375
        %1602 = vmatmul.f32.gmra.mxu0 %v1480
        %v1603 = vpop.f32.mrf.mxu0
        %v1604 = vadd.f32 %v1476, %v1603
        %1605 = vdwg.mxu0
        %1606 = vmatpush.msra.mxu0 0.0
        %1607 = vmatpush.msra.mxu0 0.0
        %1608 = vmatpush.msra.mxu0 0.0
        %1609 = vmatpush.msra.mxu0 0.0
        %1610 = vmatpush.msra.mxu0 0.0
        %1611 = vmatpush.msra.mxu0 0.0
        %1612 = vmatpush.msra.mxu0 0.0
        %1613 = vmatpush.msra.mxu0 0.0
        %1614 = vmatpush.msra.mxu0 0.0
        %1615 = vmatpush.msra.mxu0 0.0
        %1616 = vmatpush.msra.mxu0 0.0
        %1617 = vmatpush.msra.mxu0 %v1488
        %1618 = vmatpush.msra.mxu0 %v1378
        %1619 = vmatpush.msra.mxu0 %v1440
        %1620 = vmatpush.msra.mxu0 %v1408
        %1621 = vmatpush.msra.mxu0 %v1376
        %1622 = vmatmul.f32.gmra.mxu0 %v1480
        %v1623 = vpop.f32.mrf.mxu0
        %v1624 = vadd.f32 %v1476, %v1623
        %1625 = vdwg.mxu0
        %1626 = vmatpush.msra.mxu0 0.0
        %1627 = vmatpush.msra.mxu0 0.0
        %1628 = vmatpush.msra.mxu0 0.0
        %1629 = vmatpush.msra.mxu0 0.0
        %1630 = vmatpush.msra.mxu0 0.0
        %1631 = vmatpush.msra.mxu0 0.0
        %1632 = vmatpush.msra.mxu0 0.0
        %1633 = vmatpush.msra.mxu0 0.0
        %1634 = vmatpush.msra.mxu0 0.0
        %1635 = vmatpush.msra.mxu0 0.0
        %1636 = vmatpush.msra.mxu0 0.0
        %1637 = vmatpush.msra.mxu0 %v1490
        %1638 = vmatpush.msra.mxu0 %v1379
        %1639 = vmatpush.msra.mxu0 %v1441
        %1640 = vmatpush.msra.mxu0 %v1409
        %1641 = vmatpush.msra.mxu0 %v1377
        %1642 = vmatmul.f32.gmra.mxu0 %v1480
        %v1643 = vpop.f32.mrf.mxu0
        %v1644 = vadd.f32 %v1476, %v1643
        %1645 = vdwg.mxu0
        %1646 = vmatpush.msra.mxu0 0.0
        %1647 = vmatpush.msra.mxu0 0.0
        %1648 = vmatpush.msra.mxu0 0.0
        %1649 = vmatpush.msra.mxu0 0.0
        %1650 = vmatpush.msra.mxu0 0.0
        %1651 = vmatpush.msra.mxu0 0.0
        %1652 = vmatpush.msra.mxu0 0.0
        %1653 = vmatpush.msra.mxu0 0.0
        %1654 = vmatpush.msra.mxu0 0.0
        %1655 = vmatpush.msra.mxu0 0.0
        %1656 = vmatpush.msra.mxu0 0.0
        %1657 = vmatpush.msra.mxu0 %v1492
        %1658 = vmatpush.msra.mxu0 %v1380
        %1659 = vmatpush.msra.mxu0 %v1442
        %1660 = vmatpush.msra.mxu0 %v1410
        %1661 = vmatpush.msra.mxu0 %v1378
        %1662 = vmatmul.f32.gmra.mxu0 %v1480
        %v1663 = vpop.f32.mrf.mxu0
        %v1664 = vadd.f32 %v1476, %v1663
        %1665 = vdwg.mxu0
        %1666 = vmatpush.msra.mxu0 0.0
        %1667 = vmatpush.msra.mxu0 0.0
        %1668 = vmatpush.msra.mxu0 0.0
        %1669 = vmatpush.msra.mxu0 0.0
        %1670 = vmatpush.msra.mxu0 0.0
        %1671 = vmatpush.msra.mxu0 0.0
        %1672 = vmatpush.msra.mxu0 0.0
        %1673 = vmatpush.msra.mxu0 0.0
        %1674 = vmatpush.msra.mxu0 0.0
        %1675 = vmatpush.msra.mxu0 0.0
        %1676 = vmatpush.msra.mxu0 0.0
        %1677 = vmatpush.msra.mxu0 %v1494
        %1678 = vmatpush.msra.mxu0 %v1381
        %1679 = vmatpush.msra.mxu0 %v1443
        %1680 = vmatpush.msra.mxu0 %v1411
        %1681 = vmatpush.msra.mxu0 %v1379
        %1682 = vmatmul.f32.gmra.mxu0 %v1480
        %v1683 = vpop.f32.mrf.mxu0
        %v1684 = vadd.f32 %v1476, %v1683
        %1685 = vdwg.mxu0
        %1686 = vmatpush.msra.mxu0 0.0
        %1687 = vmatpush.msra.mxu0 0.0
        %1688 = vmatpush.msra.mxu0 0.0
        %1689 = vmatpush.msra.mxu0 0.0
        %1690 = vmatpush.msra.mxu0 0.0
        %1691 = vmatpush.msra.mxu0 0.0
        %1692 = vmatpush.msra.mxu0 0.0
        %1693 = vmatpush.msra.mxu0 0.0
        %1694 = vmatpush.msra.mxu0 0.0
        %1695 = vmatpush.msra.mxu0 0.0
        %1696 = vmatpush.msra.mxu0 0.0
        %1697 = vmatpush.msra.mxu0 %v1496
        %1698 = vmatpush.msra.mxu0 %v1382
        %1699 = vmatpush.msra.mxu0 %v1444
        %1700 = vmatpush.msra.mxu0 %v1412
        %1701 = vmatpush.msra.mxu0 %v1380
        %1702 = vmatmul.f32.gmra.mxu0 %v1480
        %v1703 = vpop.f32.mrf.mxu0
        %v1704 = vadd.f32 %v1476, %v1703
        %1705 = vdwg.mxu0
        %1706 = vmatpush.msra.mxu0 0.0
        %1707 = vmatpush.msra.mxu0 0.0
        %1708 = vmatpush.msra.mxu0 0.0
        %1709 = vmatpush.msra.mxu0 0.0
        %1710 = vmatpush.msra.mxu0 0.0
        %1711 = vmatpush.msra.mxu0 0.0
        %1712 = vmatpush.msra.mxu0 0.0
        %1713 = vmatpush.msra.mxu0 0.0
        %1714 = vmatpush.msra.mxu0 0.0
        %1715 = vmatpush.msra.mxu0 0.0
        %1716 = vmatpush.msra.mxu0 0.0
        %1717 = vmatpush.msra.mxu0 %v1498
        %1718 = vmatpush.msra.mxu0 %v1383
        %1719 = vmatpush.msra.mxu0 %v1445
        %1720 = vmatpush.msra.mxu0 %v1413
        %1721 = vmatpush.msra.mxu0 %v1381
        %1722 = vmatmul.f32.gmra.mxu0 %v1480
        %v1723 = vpop.f32.mrf.mxu0
        %v1724 = vadd.f32 %v1476, %v1723
        %1725 = vdwg.mxu0
        %1726 = vmatpush.msra.mxu0 0.0
        %1727 = vmatpush.msra.mxu0 0.0
        %1728 = vmatpush.msra.mxu0 0.0
        %1729 = vmatpush.msra.mxu0 0.0
        %1730 = vmatpush.msra.mxu0 0.0
        %1731 = vmatpush.msra.mxu0 0.0
        %1732 = vmatpush.msra.mxu0 0.0
        %1733 = vmatpush.msra.mxu0 0.0
        %1734 = vmatpush.msra.mxu0 0.0
        %1735 = vmatpush.msra.mxu0 0.0
        %1736 = vmatpush.msra.mxu0 0.0
        %1737 = vmatpush.msra.mxu0 %v1500
        %1738 = vmatpush.msra.mxu0 %v1384
        %1739 = vmatpush.msra.mxu0 %v1446
        %1740 = vmatpush.msra.mxu0 %v1414
        %1741 = vmatpush.msra.mxu0 %v1382
        %1742 = vmatmul.f32.gmra.mxu0 %v1480
        %v1743 = vpop.f32.mrf.mxu0
        %v1744 = vadd.f32 %v1476, %v1743
        %1745 = vdwg.mxu0
        %1746 = vmatpush.msra.mxu0 0.0
        %1747 = vmatpush.msra.mxu0 0.0
        %1748 = vmatpush.msra.mxu0 0.0
        %1749 = vmatpush.msra.mxu0 0.0
        %1750 = vmatpush.msra.mxu0 0.0
        %1751 = vmatpush.msra.mxu0 0.0
        %1752 = vmatpush.msra.mxu0 0.0
        %1753 = vmatpush.msra.mxu0 0.0
        %1754 = vmatpush.msra.mxu0 0.0
        %1755 = vmatpush.msra.mxu0 0.0
        %1756 = vmatpush.msra.mxu0 0.0
        %1757 = vmatpush.msra.mxu0 %v1502
        %1758 = vmatpush.msra.mxu0 %v1385
        %1759 = vmatpush.msra.mxu0 %v1447
        %1760 = vmatpush.msra.mxu0 %v1415
        %1761 = vmatpush.msra.mxu0 %v1383
        %1762 = vmatmul.f32.gmra.mxu0 %v1480
        %v1763 = vpop.f32.mrf.mxu0
        %v1764 = vadd.f32 %v1476, %v1763
        %1765 = vdwg.mxu0
        %1766 = vmatpush.msra.mxu0 0.0
        %1767 = vmatpush.msra.mxu0 0.0
        %1768 = vmatpush.msra.mxu0 0.0
        %1769 = vmatpush.msra.mxu0 0.0
        %1770 = vmatpush.msra.mxu0 0.0
        %1771 = vmatpush.msra.mxu0 0.0
        %1772 = vmatpush.msra.mxu0 0.0
        %1773 = vmatpush.msra.mxu0 0.0
        %1774 = vmatpush.msra.mxu0 0.0
        %1775 = vmatpush.msra.mxu0 0.0
        %1776 = vmatpush.msra.mxu0 0.0
        %1777 = vmatpush.msra.mxu0 %v1504
        %1778 = vmatpush.msra.mxu0 %v1386
        %1779 = vmatpush.msra.mxu0 %v1448
        %1780 = vmatpush.msra.mxu0 %v1416
        %1781 = vmatpush.msra.mxu0 %v1384
        %1782 = vmatmul.f32.gmra.mxu0 %v1480
        %v1783 = vpop.f32.mrf.mxu0
        %v1784 = vadd.f32 %v1476, %v1783
        %1785 = vdwg.mxu0
        %1786 = vmatpush.msra.mxu0 0.0
        %1787 = vmatpush.msra.mxu0 0.0
        %1788 = vmatpush.msra.mxu0 0.0
        %1789 = vmatpush.msra.mxu0 0.0
        %1790 = vmatpush.msra.mxu0 0.0
        %1791 = vmatpush.msra.mxu0 0.0
        %1792 = vmatpush.msra.mxu0 0.0
        %1793 = vmatpush.msra.mxu0 0.0
        %1794 = vmatpush.msra.mxu0 0.0
        %1795 = vmatpush.msra.mxu0 0.0
        %1796 = vmatpush.msra.mxu0 0.0
        %1797 = vmatpush.msra.mxu0 %v1506
        %1798 = vmatpush.msra.mxu0 %v1387
        %1799 = vmatpush.msra.mxu0 %v1449
        %1800 = vmatpush.msra.mxu0 %v1417
        %1801 = vmatpush.msra.mxu0 %v1385
        %1802 = vmatmul.f32.gmra.mxu0 %v1480
        %v1803 = vpop.f32.mrf.mxu0
        %v1804 = vadd.f32 %v1476, %v1803
        %1805 = vdwg.mxu0
        %1806 = vmatpush.msra.mxu0 0.0
        %1807 = vmatpush.msra.mxu0 0.0
        %1808 = vmatpush.msra.mxu0 0.0
        %1809 = vmatpush.msra.mxu0 0.0
        %1810 = vmatpush.msra.mxu0 0.0
        %1811 = vmatpush.msra.mxu0 0.0
        %1812 = vmatpush.msra.mxu0 0.0
        %1813 = vmatpush.msra.mxu0 0.0
        %1814 = vmatpush.msra.mxu0 0.0
        %1815 = vmatpush.msra.mxu0 0.0
        %1816 = vmatpush.msra.mxu0 0.0
        %1817 = vmatpush.msra.mxu0 %v1508
        %1818 = vmatpush.msra.mxu0 %v1388
        %1819 = vmatpush.msra.mxu0 %v1450
        %1820 = vmatpush.msra.mxu0 %v1418
        %1821 = vmatpush.msra.mxu0 %v1386
        %1822 = vmatmul.f32.gmra.mxu0 %v1480
        %v1823 = vpop.f32.mrf.mxu0
        %v1824 = vadd.f32 %v1476, %v1823
        %1825 = vdwg.mxu0
        %1826 = vmatpush.msra.mxu0 0.0
        %1827 = vmatpush.msra.mxu0 0.0
        %1828 = vmatpush.msra.mxu0 0.0
        %1829 = vmatpush.msra.mxu0 0.0
        %1830 = vmatpush.msra.mxu0 0.0
        %1831 = vmatpush.msra.mxu0 0.0
        %1832 = vmatpush.msra.mxu0 0.0
        %1833 = vmatpush.msra.mxu0 0.0
        %1834 = vmatpush.msra.mxu0 0.0
        %1835 = vmatpush.msra.mxu0 0.0
        %1836 = vmatpush.msra.mxu0 0.0
        %1837 = vmatpush.msra.mxu0 %v1510
        %1838 = vmatpush.msra.mxu0 %v1389
        %1839 = vmatpush.msra.mxu0 %v1451
        %1840 = vmatpush.msra.mxu0 %v1419
        %1841 = vmatpush.msra.mxu0 %v1387
        %1842 = vmatmul.f32.gmra.mxu0 %v1480
        %v1843 = vpop.f32.mrf.mxu0
        %v1844 = vadd.f32 %v1476, %v1843
        %1845 = vdwg.mxu0
        %1846 = vmatpush.msra.mxu0 0.0
        %1847 = vmatpush.msra.mxu0 0.0
        %1848 = vmatpush.msra.mxu0 0.0
        %1849 = vmatpush.msra.mxu0 0.0
        %1850 = vmatpush.msra.mxu0 0.0
        %1851 = vmatpush.msra.mxu0 0.0
        %1852 = vmatpush.msra.mxu0 0.0
        %1853 = vmatpush.msra.mxu0 0.0
        %1854 = vmatpush.msra.mxu0 0.0
        %1855 = vmatpush.msra.mxu0 0.0
        %1856 = vmatpush.msra.mxu0 0.0
        %1857 = vmatpush.msra.mxu0 %v1512
        %1858 = vmatpush.msra.mxu0 %v1390
        %1859 = vmatpush.msra.mxu0 %v1452
        %1860 = vmatpush.msra.mxu0 %v1420
        %1861 = vmatpush.msra.mxu0 %v1388
        %1862 = vmatmul.f32.gmra.mxu0 %v1480
        %v1863 = vpop.f32.mrf.mxu0
        %v1864 = vadd.f32 %v1476, %v1863
        %1865 = vdwg.mxu0
        %1866 = vmatpush.msra.mxu0 0.0
        %1867 = vmatpush.msra.mxu0 0.0
        %1868 = vmatpush.msra.mxu0 0.0
        %1869 = vmatpush.msra.mxu0 0.0
        %1870 = vmatpush.msra.mxu0 0.0
        %1871 = vmatpush.msra.mxu0 0.0
        %1872 = vmatpush.msra.mxu0 0.0
        %1873 = vmatpush.msra.mxu0 0.0
        %1874 = vmatpush.msra.mxu0 0.0
        %1875 = vmatpush.msra.mxu0 0.0
        %1876 = vmatpush.msra.mxu0 0.0
        %1877 = vmatpush.msra.mxu0 %v1514
        %1878 = vmatpush.msra.mxu0 %v1391
        %1879 = vmatpush.msra.mxu0 %v1453
        %1880 = vmatpush.msra.mxu0 %v1421
        %1881 = vmatpush.msra.mxu0 %v1389
        %1882 = vmatmul.f32.gmra.mxu0 %v1480
        %v1883 = vpop.f32.mrf.mxu0
        %v1884 = vadd.f32 %v1476, %v1883
        %1885 = vdwg.mxu0
        %1886 = vmatpush.msra.mxu0 0.0
        %1887 = vmatpush.msra.mxu0 0.0
        %1888 = vmatpush.msra.mxu0 0.0
        %1889 = vmatpush.msra.mxu0 0.0
        %1890 = vmatpush.msra.mxu0 0.0
        %1891 = vmatpush.msra.mxu0 0.0
        %1892 = vmatpush.msra.mxu0 0.0
        %1893 = vmatpush.msra.mxu0 0.0
        %1894 = vmatpush.msra.mxu0 0.0
        %1895 = vmatpush.msra.mxu0 0.0
        %1896 = vmatpush.msra.mxu0 0.0
        %1897 = vmatpush.msra.mxu0 %v1516
        %1898 = vmatpush.msra.mxu0 %v1392
        %1899 = vmatpush.msra.mxu0 %v1454
        %1900 = vmatpush.msra.mxu0 %v1422
        %1901 = vmatpush.msra.mxu0 %v1390
        %1902 = vmatmul.f32.gmra.mxu0 %v1480
        %v1903 = vpop.f32.mrf.mxu0
        %v1904 = vadd.f32 %v1476, %v1903
        %1905 = vdwg.mxu0
        %1906 = vmatpush.msra.mxu0 0.0
        %1907 = vmatpush.msra.mxu0 0.0
        %1908 = vmatpush.msra.mxu0 0.0
        %1909 = vmatpush.msra.mxu0 0.0
        %1910 = vmatpush.msra.mxu0 0.0
        %1911 = vmatpush.msra.mxu0 0.0
        %1912 = vmatpush.msra.mxu0 0.0
        %1913 = vmatpush.msra.mxu0 0.0
        %1914 = vmatpush.msra.mxu0 0.0
        %1915 = vmatpush.msra.mxu0 0.0
        %1916 = vmatpush.msra.mxu0 0.0
        %1917 = vmatpush.msra.mxu0 %v1518
        %1918 = vmatpush.msra.mxu0 %v1393
        %1919 = vmatpush.msra.mxu0 %v1455
        %1920 = vmatpush.msra.mxu0 %v1423
        %1921 = vmatpush.msra.mxu0 %v1391
        %1922 = vmatmul.f32.gmra.mxu0 %v1480
        %v1923 = vpop.f32.mrf.mxu0
        %v1924 = vadd.f32 %v1476, %v1923
        %1925 = vdwg.mxu0
        %1926 = vmatpush.msra.mxu0 0.0
        %1927 = vmatpush.msra.mxu0 0.0
        %1928 = vmatpush.msra.mxu0 0.0
        %1929 = vmatpush.msra.mxu0 0.0
        %1930 = vmatpush.msra.mxu0 0.0
        %1931 = vmatpush.msra.mxu0 0.0
        %1932 = vmatpush.msra.mxu0 0.0
        %1933 = vmatpush.msra.mxu0 0.0
        %1934 = vmatpush.msra.mxu0 0.0
        %1935 = vmatpush.msra.mxu0 0.0
        %1936 = vmatpush.msra.mxu0 0.0
        %1937 = vmatpush.msra.mxu0 %v1520
        %1938 = vmatpush.msra.mxu0 %v1394
        %1939 = vmatpush.msra.mxu0 %v1456
        %1940 = vmatpush.msra.mxu0 %v1424
        %1941 = vmatpush.msra.mxu0 %v1392
        %1942 = vmatmul.f32.gmra.mxu0 %v1480
        %v1943 = vpop.f32.mrf.mxu0
        %v1944 = vadd.f32 %v1476, %v1943
        %1945 = vdwg.mxu0
        %1946 = vmatpush.msra.mxu0 0.0
        %1947 = vmatpush.msra.mxu0 0.0
        %1948 = vmatpush.msra.mxu0 0.0
        %1949 = vmatpush.msra.mxu0 0.0
        %1950 = vmatpush.msra.mxu0 0.0
        %1951 = vmatpush.msra.mxu0 0.0
        %1952 = vmatpush.msra.mxu0 0.0
        %1953 = vmatpush.msra.mxu0 0.0
        %1954 = vmatpush.msra.mxu0 0.0
        %1955 = vmatpush.msra.mxu0 0.0
        %1956 = vmatpush.msra.mxu0 0.0
        %1957 = vmatpush.msra.mxu0 %v1522
        %1958 = vmatpush.msra.mxu0 %v1395
        %1959 = vmatpush.msra.mxu0 %v1457
        %1960 = vmatpush.msra.mxu0 %v1425
        %1961 = vmatpush.msra.mxu0 %v1393
        %1962 = vmatmul.f32.gmra.mxu0 %v1480
        %v1963 = vpop.f32.mrf.mxu0
        %v1964 = vadd.f32 %v1476, %v1963
        %1965 = vdwg.mxu0
        %1966 = vmatpush.msra.mxu0 0.0
        %1967 = vmatpush.msra.mxu0 0.0
        %1968 = vmatpush.msra.mxu0 0.0
        %1969 = vmatpush.msra.mxu0 0.0
        %1970 = vmatpush.msra.mxu0 0.0
        %1971 = vmatpush.msra.mxu0 0.0
        %1972 = vmatpush.msra.mxu0 0.0
        %1973 = vmatpush.msra.mxu0 0.0
        %1974 = vmatpush.msra.mxu0 0.0
        %1975 = vmatpush.msra.mxu0 0.0
        %1976 = vmatpush.msra.mxu0 0.0
        %1977 = vmatpush.msra.mxu0 %v1524
        %1978 = vmatpush.msra.mxu0 %v1396
        %1979 = vmatpush.msra.mxu0 %v1458
        %1980 = vmatpush.msra.mxu0 %v1426
        %1981 = vmatpush.msra.mxu0 %v1394
        %1982 = vmatmul.f32.gmra.mxu0 %v1480
        %v1983 = vpop.f32.mrf.mxu0
        %v1984 = vadd.f32 %v1476, %v1983
        %1985 = vdwg.mxu0
        %1986 = vmatpush.msra.mxu0 0.0
        %1987 = vmatpush.msra.mxu0 0.0
        %1988 = vmatpush.msra.mxu0 0.0
        %1989 = vmatpush.msra.mxu0 0.0
        %1990 = vmatpush.msra.mxu0 0.0
        %1991 = vmatpush.msra.mxu0 0.0
        %1992 = vmatpush.msra.mxu0 0.0
        %1993 = vmatpush.msra.mxu0 0.0
        %1994 = vmatpush.msra.mxu0 0.0
        %1995 = vmatpush.msra.mxu0 0.0
        %1996 = vmatpush.msra.mxu0 0.0
        %1997 = vmatpush.msra.mxu0 %v1526
        %1998 = vmatpush.msra.mxu0 %v1397
        %1999 = vmatpush.msra.mxu0 %v1459
        %2000 = vmatpush.msra.mxu0 %v1427
        %2001 = vmatpush.msra.mxu0 %v1395
        %2002 = vmatmul.f32.gmra.mxu0 %v1480
        %v2003 = vpop.f32.mrf.mxu0
        %v2004 = vadd.f32 %v1476, %v2003
        %2005 = vdwg.mxu0
        %2006 = vmatpush.msra.mxu0 0.0
        %2007 = vmatpush.msra.mxu0 0.0
        %2008 = vmatpush.msra.mxu0 0.0
        %2009 = vmatpush.msra.mxu0 0.0
        %2010 = vmatpush.msra.mxu0 0.0
        %2011 = vmatpush.msra.mxu0 0.0
        %2012 = vmatpush.msra.mxu0 0.0
        %2013 = vmatpush.msra.mxu0 0.0
        %2014 = vmatpush.msra.mxu0 0.0
        %2015 = vmatpush.msra.mxu0 0.0
        %2016 = vmatpush.msra.mxu0 0.0
        %2017 = vmatpush.msra.mxu0 %v1528
        %2018 = vmatpush.msra.mxu0 %v1398
        %2019 = vmatpush.msra.mxu0 %v1460
        %2020 = vmatpush.msra.mxu0 %v1428
        %2021 = vmatpush.msra.mxu0 %v1396
        %2022 = vmatmul.f32.gmra.mxu0 %v1480
        %v2023 = vpop.f32.mrf.mxu0
        %v2024 = vadd.f32 %v1476, %v2023
        %2025 = vdwg.mxu0
        %2026 = vmatpush.msra.mxu0 0.0
        %2027 = vmatpush.msra.mxu0 0.0
        %2028 = vmatpush.msra.mxu0 0.0
        %2029 = vmatpush.msra.mxu0 0.0
        %2030 = vmatpush.msra.mxu0 0.0
        %2031 = vmatpush.msra.mxu0 0.0
        %2032 = vmatpush.msra.mxu0 0.0
        %2033 = vmatpush.msra.mxu0 0.0
        %2034 = vmatpush.msra.mxu0 0.0
        %2035 = vmatpush.msra.mxu0 0.0
        %2036 = vmatpush.msra.mxu0 0.0
        %2037 = vmatpush.msra.mxu0 %v1530
        %2038 = vmatpush.msra.mxu0 %v1399
        %2039 = vmatpush.msra.mxu0 %v1461
        %2040 = vmatpush.msra.mxu0 %v1429
        %2041 = vmatpush.msra.mxu0 %v1397
        %2042 = vmatmul.f32.gmra.mxu0 %v1480
        %v2043 = vpop.f32.mrf.mxu0
        %v2044 = vadd.f32 %v1476, %v2043
        %2045 = vdwg.mxu0
        %2046 = vmatpush.msra.mxu0 0.0
        %2047 = vmatpush.msra.mxu0 0.0
        %2048 = vmatpush.msra.mxu0 0.0
        %2049 = vmatpush.msra.mxu0 0.0
        %2050 = vmatpush.msra.mxu0 0.0
        %2051 = vmatpush.msra.mxu0 0.0
        %2052 = vmatpush.msra.mxu0 0.0
        %2053 = vmatpush.msra.mxu0 0.0
        %2054 = vmatpush.msra.mxu0 0.0
        %2055 = vmatpush.msra.mxu0 0.0
        %2056 = vmatpush.msra.mxu0 0.0
        %2057 = vmatpush.msra.mxu0 %v1532
        %2058 = vmatpush.msra.mxu0 %v1400
        %2059 = vmatpush.msra.mxu0 %v1462
        %2060 = vmatpush.msra.mxu0 %v1430
        %2061 = vmatpush.msra.mxu0 %v1398
        %2062 = vmatmul.f32.gmra.mxu0 %v1480
        %v2063 = vpop.f32.mrf.mxu0
        %v2064 = vadd.f32 %v1476, %v2063
        %2065 = vdwg.mxu0
        %2066 = vmatpush.msra.mxu0 0.0
        %2067 = vmatpush.msra.mxu0 0.0
        %2068 = vmatpush.msra.mxu0 0.0
        %2069 = vmatpush.msra.mxu0 0.0
        %2070 = vmatpush.msra.mxu0 0.0
        %2071 = vmatpush.msra.mxu0 0.0
        %2072 = vmatpush.msra.mxu0 0.0
        %2073 = vmatpush.msra.mxu0 0.0
        %2074 = vmatpush.msra.mxu0 0.0
        %2075 = vmatpush.msra.mxu0 0.0
        %2076 = vmatpush.msra.mxu0 0.0
        %2077 = vmatpush.msra.mxu0 %v1534
        %2078 = vmatpush.msra.mxu0 %v1401
        %2079 = vmatpush.msra.mxu0 %v1463
        %2080 = vmatpush.msra.mxu0 %v1431
        %2081 = vmatpush.msra.mxu0 %v1399
        %2082 = vmatmul.f32.gmra.mxu0 %v1480
        %v2083 = vpop.f32.mrf.mxu0
        %v2084 = vadd.f32 %v1476, %v2083
        %2085 = vdwg.mxu0
        %2086 = vmatpush.msra.mxu0 0.0
        %2087 = vmatpush.msra.mxu0 0.0
        %2088 = vmatpush.msra.mxu0 0.0
        %2089 = vmatpush.msra.mxu0 0.0
        %2090 = vmatpush.msra.mxu0 0.0
        %2091 = vmatpush.msra.mxu0 0.0
        %2092 = vmatpush.msra.mxu0 0.0
        %2093 = vmatpush.msra.mxu0 0.0
        %2094 = vmatpush.msra.mxu0 0.0
        %2095 = vmatpush.msra.mxu0 0.0
        %2096 = vmatpush.msra.mxu0 0.0
        %2097 = vmatpush.msra.mxu0 %v1536
        %2098 = vmatpush.msra.mxu0 %v1402
        %2099 = vmatpush.msra.mxu0 %v1464
        %2100 = vmatpush.msra.mxu0 %v1432
        %2101 = vmatpush.msra.mxu0 %v1400
        %2102 = vmatmul.f32.gmra.mxu0 %v1480
        %v2103 = vpop.f32.mrf.mxu0
        %v2104 = vadd.f32 %v1476, %v2103
        %2105 = vdwg.mxu0
        %2106 = vmatpush.msra.mxu0 0.0
        %2107 = vmatpush.msra.mxu0 0.0
        %2108 = vmatpush.msra.mxu0 0.0
        %2109 = vmatpush.msra.mxu0 0.0
        %2110 = vmatpush.msra.mxu0 0.0
        %2111 = vmatpush.msra.mxu0 0.0
        %2112 = vmatpush.msra.mxu0 0.0
        %2113 = vmatpush.msra.mxu0 0.0
        %2114 = vmatpush.msra.mxu0 0.0
        %2115 = vmatpush.msra.mxu0 0.0
        %2116 = vmatpush.msra.mxu0 0.0
        %2117 = vmatpush.msra.mxu0 %v1538
        %2118 = vmatpush.msra.mxu0 %v1403
        %2119 = vmatpush.msra.mxu0 %v1465
        %2120 = vmatpush.msra.mxu0 %v1433
        %2121 = vmatpush.msra.mxu0 %v1401
        %2122 = vmatmul.f32.gmra.mxu0 %v1480
        %v2123 = vpop.f32.mrf.mxu0
        %v2124 = vadd.f32 %v1476, %v2123
        %2125 = vdwg.mxu0
        %2126 = vmatpush.msra.mxu0 0.0
        %2127 = vmatpush.msra.mxu0 0.0
        %2128 = vmatpush.msra.mxu0 0.0
        %2129 = vmatpush.msra.mxu0 0.0
        %2130 = vmatpush.msra.mxu0 0.0
        %2131 = vmatpush.msra.mxu0 0.0
        %2132 = vmatpush.msra.mxu0 0.0
        %2133 = vmatpush.msra.mxu0 0.0
        %2134 = vmatpush.msra.mxu0 0.0
        %2135 = vmatpush.msra.mxu0 0.0
        %2136 = vmatpush.msra.mxu0 0.0
        %2137 = vmatpush.msra.mxu0 %v1540
        %2138 = vmatpush.msra.mxu0 %v1404
        %2139 = vmatpush.msra.mxu0 %v1466
        %2140 = vmatpush.msra.mxu0 %v1434
        %2141 = vmatpush.msra.mxu0 %v1402
        %2142 = vmatmul.f32.gmra.mxu0 %v1480
        %v2143 = vpop.f32.mrf.mxu0
        %v2144 = vadd.f32 %v1476, %v2143
        %2145 = vdwg.mxu0
        %2146 = vmatpush.msra.mxu0 0.0
        %2147 = vmatpush.msra.mxu0 0.0
        %2148 = vmatpush.msra.mxu0 0.0
        %2149 = vmatpush.msra.mxu0 0.0
        %2150 = vmatpush.msra.mxu0 0.0
        %2151 = vmatpush.msra.mxu0 0.0
        %2152 = vmatpush.msra.mxu0 0.0
        %2153 = vmatpush.msra.mxu0 0.0
        %2154 = vmatpush.msra.mxu0 0.0
        %2155 = vmatpush.msra.mxu0 0.0
        %2156 = vmatpush.msra.mxu0 0.0
        %2157 = vmatpush.msra.mxu0 %v1542
        %2158 = vmatpush.msra.mxu0 %v1469
        %2159 = vmatpush.msra.mxu0 %v1467
        %2160 = vmatpush.msra.mxu0 %v1435
        %2161 = vmatpush.msra.mxu0 %v1403
        %2162 = vmatmul.f32.gmra.mxu0 %v1480
        %v2163 = vpop.f32.mrf.mxu0
        %v2164 = vadd.f32 %v1476, %v2163
        %2165 = vdwg.mxu0
        %2166 = vmatpush.msra.mxu0 0.0
        %2167 = vmatpush.msra.mxu0 0.0
        %2168 = vmatpush.msra.mxu0 0.0
        %2169 = vmatpush.msra.mxu0 0.0
        %2170 = vmatpush.msra.mxu0 0.0
        %2171 = vmatpush.msra.mxu0 0.0
        %2172 = vmatpush.msra.mxu0 0.0
        %2173 = vmatpush.msra.mxu0 0.0
        %2174 = vmatpush.msra.mxu0 0.0
        %2175 = vmatpush.msra.mxu0 0.0
        %2176 = vmatpush.msra.mxu0 0.0
        %2177 = vmatpush.msra.mxu0 %v1544
        %2178 = vmatpush.msra.mxu0 %v1470
        %2179 = vmatpush.msra.mxu0 %v1468
        %2180 = vmatpush.msra.mxu0 %v1436
        %2181 = vmatpush.msra.mxu0 %v1404
        %2182 = vmatmul.f32.gmra.mxu0 %v1480
        %v2183 = vpop.f32.mrf.mxu0
        %v2184 = vadd.f32 %v1476, %v2183
        %2185 = vdwg.mxu0
        %vm2186 = vcmp.ge.f32.partialorder %v1564, 0.0
        %vm2187 = vcmp.ge.f32.partialorder %v1584, 0.0
        %vm2188 = vcmp.ge.f32.partialorder %v1604, 0.0
        %vm2189 = vcmp.ge.f32.partialorder %v1624, 0.0
        %vm2190 = vcmp.ge.f32.partialorder %v1644, 0.0
        %vm2191 = vcmp.ge.f32.partialorder %v1664, 0.0
        %vm2192 = vcmp.ge.f32.partialorder %v1684, 0.0
        %vm2193 = vcmp.ge.f32.partialorder %v1704, 0.0
        %vm2194 = vcmp.ge.f32.partialorder %v1724, 0.0
        %vm2195 = vcmp.ge.f32.partialorder %v1744, 0.0
        %vm2196 = vcmp.ge.f32.partialorder %v1764, 0.0
        %vm2197 = vcmp.ge.f32.partialorder %v1784, 0.0
        %vm2198 = vcmp.ge.f32.partialorder %v1804, 0.0
        %vm2199 = vcmp.ge.f32.partialorder %v1824, 0.0
        %vm2200 = vcmp.ge.f32.partialorder %v1844, 0.0
        %vm2201 = vcmp.ge.f32.partialorder %v1864, 0.0
        %vm2202 = vcmp.ge.f32.partialorder %v1884, 0.0
        %vm2203 = vcmp.ge.f32.partialorder %v1904, 0.0
        %vm2204 = vcmp.ge.f32.partialorder %v1924, 0.0
        %vm2205 = vcmp.ge.f32.partialorder %v1944, 0.0
        %vm2206 = vcmp.ge.f32.partialorder %v1964, 0.0
        %vm2207 = vcmp.ge.f32.partialorder %v1984, 0.0
        %vm2208 = vcmp.ge.f32.partialorder %v2004, 0.0
        %vm2209 = vcmp.ge.f32.partialorder %v2024, 0.0
        %vm2210 = vcmp.ge.f32.partialorder %v2044, 0.0
        %vm2211 = vcmp.ge.f32.partialorder %v2064, 0.0
        %vm2212 = vcmp.ge.f32.partialorder %v2084, 0.0
        %vm2213 = vcmp.ge.f32.partialorder %v2104, 0.0
        %vm2214 = vcmp.ge.f32.partialorder %v2124, 0.0
        %vm2215 = vcmp.ge.f32.partialorder %v2144, 0.0
        %vm2216 = vcmp.ge.f32.partialorder %v2164, 0.0
        %vm2217 = vcmp.ge.f32.partialorder %v2184, 0.0
        %v2218 = vmul.f32 %v1564, 0.2
        %v2219 = vmul.f32 %v1584, 0.2
        %v2220 = vmul.f32 %v1604, 0.2
        %v2221 = vmul.f32 %v1624, 0.2
        %v2222 = vmul.f32 %v1644, 0.2
        %v2223 = vmul.f32 %v1664, 0.2
        %v2224 = vmul.f32 %v1684, 0.2
        %v2225 = vmul.f32 %v1704, 0.2
        %v2226 = vmul.f32 %v1724, 0.2
        %v2227 = vmul.f32 %v1744, 0.2
        %v2228 = vmul.f32 %v1764, 0.2
        %v2229 = vmul.f32 %v1784, 0.2
        %v2230 = vmul.f32 %v1804, 0.2
        %v2231 = vmul.f32 %v1824, 0.2
        %v2232 = vmul.f32 %v1844, 0.2
        %v2233 = vmul.f32 %v1864, 0.2
        %v2234 = vmul.f32 %v1884, 0.2
        %v2235 = vmul.f32 %v1904, 0.2
        %v2236 = vmul.f32 %v1924, 0.2
        %v2237 = vmul.f32 %v1944, 0.2
        %v2238 = vmul.f32 %v1964, 0.2
        %v2239 = vmul.f32 %v1984, 0.2
        %v2240 = vmul.f32 %v2004, 0.2
        %v2241 = vmul.f32 %v2024, 0.2
        %v2242 = vmul.f32 %v2044, 0.2
        %v2243 = vmul.f32 %v2064, 0.2
        %v2244 = vmul.f32 %v2084, 0.2
        %v2245 = vmul.f32 %v2104, 0.2
        %v2246 = vmul.f32 %v2124, 0.2
        %v2247 = vmul.f32 %v2144, 0.2
        %v2248 = vmul.f32 %v2164, 0.2
        %v2249 = vmul.f32 %v2184, 0.2
        %v2250 = vsel %vm2186, %v1564, %v2218
        %v2251 = vsel %vm2187, %v1584, %v2219
        %v2252 = vsel %vm2188, %v1604, %v2220
        %v2253 = vsel %vm2189, %v1624, %v2221
        %v2254 = vsel %vm2190, %v1644, %v2222
        %v2255 = vsel %vm2191, %v1664, %v2223
        %v2256 = vsel %vm2192, %v1684, %v2224
        %v2257 = vsel %vm2193, %v1704, %v2225
        %v2258 = vsel %vm2194, %v1724, %v2226
        %v2259 = vsel %vm2195, %v1744, %v2227
        %v2260 = vsel %vm2196, %v1764, %v2228
        %v2261 = vsel %vm2197, %v1784, %v2229
        %v2262 = vsel %vm2198, %v1804, %v2230
        %v2263 = vsel %vm2199, %v1824, %v2231
        %v2264 = vsel %vm2200, %v1844, %v2232
        %v2265 = vsel %vm2201, %v1864, %v2233
        %v2266 = vsel %vm2202, %v1884, %v2234
        %v2267 = vsel %vm2203, %v1904, %v2235
        %v2268 = vsel %vm2204, %v1924, %v2236
        %v2269 = vsel %vm2205, %v1944, %v2237
        %v2270 = vsel %vm2206, %v1964, %v2238
        %v2271 = vsel %vm2207, %v1984, %v2239
        %v2272 = vsel %vm2208, %v2004, %v2240
        %v2273 = vsel %vm2209, %v2024, %v2241
        %v2274 = vsel %vm2210, %v2044, %v2242
        %v2275 = vsel %vm2211, %v2064, %v2243
        %v2276 = vsel %vm2212, %v2084, %v2244
        %v2277 = vsel %vm2213, %v2104, %v2245
        %v2278 = vsel %vm2214, %v2124, %v2246
        %v2279 = vsel %vm2215, %v2144, %v2247
        %v2280 = vsel %vm2216, %v2164, %v2248
        %v2281 = vsel %vm2217, %v2184, %v2249
        %v2282 = vxor.u32 %v1564, 2147483648
        %v2283 = vxor.u32 %v1584, 2147483648
        %v2284 = vxor.u32 %v1604, 2147483648
        %v2285 = vxor.u32 %v1624, 2147483648
        %v2286 = vxor.u32 %v1644, 2147483648
        %v2287 = vxor.u32 %v1664, 2147483648
        %v2288 = vxor.u32 %v1684, 2147483648
        %v2289 = vxor.u32 %v1704, 2147483648
        %v2290 = vxor.u32 %v1724, 2147483648
        %v2291 = vxor.u32 %v1744, 2147483648
        %v2292 = vxor.u32 %v1764, 2147483648
        %v2293 = vxor.u32 %v1784, 2147483648
        %v2294 = vxor.u32 %v1804, 2147483648
        %v2295 = vxor.u32 %v1824, 2147483648
        %v2296 = vxor.u32 %v1844, 2147483648
        %v2297 = vxor.u32 %v1864, 2147483648
        %v2298 = vxor.u32 %v1884, 2147483648
        %v2299 = vxor.u32 %v1904, 2147483648
        %v2300 = vxor.u32 %v1924, 2147483648
        %v2301 = vxor.u32 %v1944, 2147483648
        %v2302 = vxor.u32 %v1964, 2147483648
        %v2303 = vxor.u32 %v1984, 2147483648
        %v2304 = vxor.u32 %v2004, 2147483648
        %v2305 = vxor.u32 %v2024, 2147483648
        %v2306 = vxor.u32 %v2044, 2147483648
        %v2307 = vxor.u32 %v2064, 2147483648
        %v2308 = vxor.u32 %v2084, 2147483648
        %v2309 = vxor.u32 %v2104, 2147483648
        %v2310 = vxor.u32 %v2124, 2147483648
        %v2311 = vxor.u32 %v2144, 2147483648
        %v2312 = vxor.u32 %v2164, 2147483648
        %v2313 = vxor.u32 %v2184, 2147483648
        %v2314 = vmul.f32 %v2282, 1.442695
        %v2315 = vpow.pop %v2314
        %v2316 = vmul.f32 %v2283, 1.442695
        %v2317 = vpow.pop %v2316
        %v2318 = vmul.f32 %v2284, 1.442695
        %v2319 = vpow.pop %v2318
        %v2320 = vmul.f32 %v2285, 1.442695
        %v2321 = vpow.pop %v2320
        %v2322 = vmul.f32 %v2286, 1.442695
        %v2323 = vpow.pop %v2322
        %v2324 = vmul.f32 %v2287, 1.442695
        %v2325 = vpow.pop %v2324
        %v2326 = vmul.f32 %v2288, 1.442695
        %v2327 = vpow.pop %v2326
        %v2328 = vmul.f32 %v2289, 1.442695
        %v2329 = vpow.pop %v2328
        %v2330 = vmul.f32 %v2290, 1.442695
        %v2331 = vpow.pop %v2330
        %v2332 = vmul.f32 %v2291, 1.442695
        %v2333 = vpow.pop %v2332
        %v2334 = vmul.f32 %v2292, 1.442695
        %v2335 = vpow.pop %v2334
        %v2336 = vmul.f32 %v2293, 1.442695
        %v2337 = vpow.pop %v2336
        %v2338 = vmul.f32 %v2294, 1.442695
        %v2339 = vpow.pop %v2338
        %v2340 = vmul.f32 %v2295, 1.442695
        %v2341 = vpow.pop %v2340
        %v2342 = vmul.f32 %v2296, 1.442695
        %v2343 = vpow.pop %v2342
        %v2344 = vmul.f32 %v2297, 1.442695
        %v2345 = vpow.pop %v2344
        %v2346 = vmul.f32 %v2298, 1.442695
        %v2347 = vpow.pop %v2346
        %v2348 = vmul.f32 %v2299, 1.442695
        %v2349 = vpow.pop %v2348
        %v2350 = vmul.f32 %v2300, 1.442695
        %v2351 = vpow.pop %v2350
        %v2352 = vmul.f32 %v2301, 1.442695
        %v2353 = vpow.pop %v2352
        %v2354 = vmul.f32 %v2302, 1.442695
        %v2355 = vpow.pop %v2354
        %v2356 = vmul.f32 %v2303, 1.442695
        %v2357 = vpow.pop %v2356
        %v2358 = vmul.f32 %v2304, 1.442695
        %v2359 = vpow.pop %v2358
        %v2360 = vmul.f32 %v2305, 1.442695
        %v2361 = vpow.pop %v2360
        %v2362 = vmul.f32 %v2306, 1.442695
        %v2363 = vpow.pop %v2362
        %v2364 = vmul.f32 %v2307, 1.442695
        %v2365 = vpow.pop %v2364
        %v2366 = vmul.f32 %v2308, 1.442695
        %v2367 = vpow.pop %v2366
        %v2368 = vmul.f32 %v2309, 1.442695
        %v2369 = vpow.pop %v2368
        %v2370 = vmul.f32 %v2310, 1.442695
        %v2371 = vpow.pop %v2370
        %v2372 = vmul.f32 %v2311, 1.442695
        %v2373 = vpow.pop %v2372
        %v2374 = vmul.f32 %v2312, 1.442695
        %v2375 = vpow.pop %v2374
        %v2376 = vmul.f32 %v2313, 1.442695
        %v2377 = vpow.pop %v2376
        %v2378 = vadd.f32 %v2315, 1.0
        %v2379 = vadd.f32 %v2317, 1.0
        %v2380 = vadd.f32 %v2319, 1.0
        %v2381 = vadd.f32 %v2321, 1.0
        %v2382 = vadd.f32 %v2323, 1.0
        %v2383 = vadd.f32 %v2325, 1.0
        %v2384 = vadd.f32 %v2327, 1.0
        %v2385 = vadd.f32 %v2329, 1.0
        %v2386 = vadd.f32 %v2331, 1.0
        %v2387 = vadd.f32 %v2333, 1.0
        %v2388 = vadd.f32 %v2335, 1.0
        %v2389 = vadd.f32 %v2337, 1.0
        %v2390 = vadd.f32 %v2339, 1.0
        %v2391 = vadd.f32 %v2341, 1.0
        %v2392 = vadd.f32 %v2343, 1.0
        %v2393 = vadd.f32 %v2345, 1.0
        %v2394 = vadd.f32 %v2347, 1.0
        %v2395 = vadd.f32 %v2349, 1.0
        %v2396 = vadd.f32 %v2351, 1.0
        %v2397 = vadd.f32 %v2353, 1.0
        %v2398 = vadd.f32 %v2355, 1.0
        %v2399 = vadd.f32 %v2357, 1.0
        %v2400 = vadd.f32 %v2359, 1.0
        %v2401 = vadd.f32 %v2361, 1.0
        %v2402 = vadd.f32 %v2363, 1.0
        %v2403 = vadd.f32 %v2365, 1.0
        %v2404 = vadd.f32 %v2367, 1.0
        %v2405 = vadd.f32 %v2369, 1.0
        %v2406 = vadd.f32 %v2371, 1.0
        %v2407 = vadd.f32 %v2373, 1.0
        %v2408 = vadd.f32 %v2375, 1.0
        %v2409 = vadd.f32 %v2377, 1.0
        %v2410 = vrcp.pop %v2378
        %v2411 = vmul.f32 %v2378, %v2410
        %v2412 = vsub.f32 1.0, %v2411
        %v2413 = vmul.f32 %v2410, %v2412
        %v2414 = vadd.f32 %v2410, %v2413
        %vm2415 = vweird.f32 %v2378
        %vm2416 = vweird.f32 %v2410
        %vm2417 = vmor %vm2415, %vm2416
        %v2418 = vsel %vm2417, %v2410, %v2414
        %v2419 = vand.u32 2147483647, %v2378
        %vm2420 = vcmp.eq.f32.partialorder %v2419, 8.507059e+37
        %v2421 = vand.u32 %v2378, 2147483648
        %v2422 = vor.u32 1.1754944e-38, %v2421
        %v2423 = vsel %vm2420, %v2422, %v2418
        %v2424 = vmul.f32 1.0, %v2423
        %v2425 = vrcp.pop %v2379
        %v2426 = vmul.f32 %v2379, %v2425
        %v2427 = vsub.f32 1.0, %v2426
        %v2428 = vmul.f32 %v2425, %v2427
        %v2429 = vadd.f32 %v2425, %v2428
        %vm2430 = vweird.f32 %v2379
        %vm2431 = vweird.f32 %v2425
        %vm2432 = vmor %vm2430, %vm2431
        %v2433 = vsel %vm2432, %v2425, %v2429
        %v2434 = vand.u32 2147483647, %v2379
        %vm2435 = vcmp.eq.f32.partialorder %v2434, 8.507059e+37
        %v2436 = vand.u32 %v2379, 2147483648
        %v2437 = vor.u32 1.1754944e-38, %v2436
        %v2438 = vsel %vm2435, %v2437, %v2433
        %v2439 = vmul.f32 1.0, %v2438
        %v2440 = vrcp.pop %v2380
        %v2441 = vmul.f32 %v2380, %v2440
        %v2442 = vsub.f32 1.0, %v2441
        %v2443 = vmul.f32 %v2440, %v2442
        %v2444 = vadd.f32 %v2440, %v2443
        %vm2445 = vweird.f32 %v2380
        %vm2446 = vweird.f32 %v2440
        %vm2447 = vmor %vm2445, %vm2446
        %v2448 = vsel %vm2447, %v2440, %v2444
        %v2449 = vand.u32 2147483647, %v2380
        %vm2450 = vcmp.eq.f32.partialorder %v2449, 8.507059e+37
        %v2451 = vand.u32 %v2380, 2147483648
        %v2452 = vor.u32 1.1754944e-38, %v2451
        %v2453 = vsel %vm2450, %v2452, %v2448
        %v2454 = vmul.f32 1.0, %v2453
        %v2455 = vrcp.pop %v2381
        %v2456 = vmul.f32 %v2381, %v2455
        %v2457 = vsub.f32 1.0, %v2456
        %v2458 = vmul.f32 %v2455, %v2457
        %v2459 = vadd.f32 %v2455, %v2458
        %vm2460 = vweird.f32 %v2381
        %vm2461 = vweird.f32 %v2455
        %vm2462 = vmor %vm2460, %vm2461
        %v2463 = vsel %vm2462, %v2455, %v2459
        %v2464 = vand.u32 2147483647, %v2381
        %vm2465 = vcmp.eq.f32.partialorder %v2464, 8.507059e+37
        %v2466 = vand.u32 %v2381, 2147483648
        %v2467 = vor.u32 1.1754944e-38, %v2466
        %v2468 = vsel %vm2465, %v2467, %v2463
        %v2469 = vmul.f32 1.0, %v2468
        %v2470 = vrcp.pop %v2382
        %v2471 = vmul.f32 %v2382, %v2470
        %v2472 = vsub.f32 1.0, %v2471
        %v2473 = vmul.f32 %v2470, %v2472
        %v2474 = vadd.f32 %v2470, %v2473
        %vm2475 = vweird.f32 %v2382
        %vm2476 = vweird.f32 %v2470
        %vm2477 = vmor %vm2475, %vm2476
        %v2478 = vsel %vm2477, %v2470, %v2474
        %v2479 = vand.u32 2147483647, %v2382
        %vm2480 = vcmp.eq.f32.partialorder %v2479, 8.507059e+37
        %v2481 = vand.u32 %v2382, 2147483648
        %v2482 = vor.u32 1.1754944e-38, %v2481
        %v2483 = vsel %vm2480, %v2482, %v2478
        %v2484 = vmul.f32 1.0, %v2483
        %v2485 = vrcp.pop %v2383
        %v2486 = vmul.f32 %v2383, %v2485
        %v2487 = vsub.f32 1.0, %v2486
        %v2488 = vmul.f32 %v2485, %v2487
        %v2489 = vadd.f32 %v2485, %v2488
        %vm2490 = vweird.f32 %v2383
        %vm2491 = vweird.f32 %v2485
        %vm2492 = vmor %vm2490, %vm2491
        %v2493 = vsel %vm2492, %v2485, %v2489
        %v2494 = vand.u32 2147483647, %v2383
        %vm2495 = vcmp.eq.f32.partialorder %v2494, 8.507059e+37
        %v2496 = vand.u32 %v2383, 2147483648
        %v2497 = vor.u32 1.1754944e-38, %v2496
        %v2498 = vsel %vm2495, %v2497, %v2493
        %v2499 = vmul.f32 1.0, %v2498
        %v2500 = vrcp.pop %v2384
        %v2501 = vmul.f32 %v2384, %v2500
        %v2502 = vsub.f32 1.0, %v2501
        %v2503 = vmul.f32 %v2500, %v2502
        %v2504 = vadd.f32 %v2500, %v2503
        %vm2505 = vweird.f32 %v2384
        %vm2506 = vweird.f32 %v2500
        %vm2507 = vmor %vm2505, %vm2506
        %v2508 = vsel %vm2507, %v2500, %v2504
        %v2509 = vand.u32 2147483647, %v2384
        %vm2510 = vcmp.eq.f32.partialorder %v2509, 8.507059e+37
        %v2511 = vand.u32 %v2384, 2147483648
        %v2512 = vor.u32 1.1754944e-38, %v2511
        %v2513 = vsel %vm2510, %v2512, %v2508
        %v2514 = vmul.f32 1.0, %v2513
        %v2515 = vrcp.pop %v2385
        %v2516 = vmul.f32 %v2385, %v2515
        %v2517 = vsub.f32 1.0, %v2516
        %v2518 = vmul.f32 %v2515, %v2517
        %v2519 = vadd.f32 %v2515, %v2518
        %vm2520 = vweird.f32 %v2385
        %vm2521 = vweird.f32 %v2515
        %vm2522 = vmor %vm2520, %vm2521
        %v2523 = vsel %vm2522, %v2515, %v2519
        %v2524 = vand.u32 2147483647, %v2385
        %vm2525 = vcmp.eq.f32.partialorder %v2524, 8.507059e+37
        %v2526 = vand.u32 %v2385, 2147483648
        %v2527 = vor.u32 1.1754944e-38, %v2526
        %v2528 = vsel %vm2525, %v2527, %v2523
        %v2529 = vmul.f32 1.0, %v2528
        %v2530 = vrcp.pop %v2386
        %v2531 = vmul.f32 %v2386, %v2530
        %v2532 = vsub.f32 1.0, %v2531
        %v2533 = vmul.f32 %v2530, %v2532
        %v2534 = vadd.f32 %v2530, %v2533
        %vm2535 = vweird.f32 %v2386
        %vm2536 = vweird.f32 %v2530
        %vm2537 = vmor %vm2535, %vm2536
        %v2538 = vsel %vm2537, %v2530, %v2534
        %v2539 = vand.u32 2147483647, %v2386
        %vm2540 = vcmp.eq.f32.partialorder %v2539, 8.507059e+37
        %v2541 = vand.u32 %v2386, 2147483648
        %v2542 = vor.u32 1.1754944e-38, %v2541
        %v2543 = vsel %vm2540, %v2542, %v2538
        %v2544 = vmul.f32 1.0, %v2543
        %v2545 = vrcp.pop %v2387
        %v2546 = vmul.f32 %v2387, %v2545
        %v2547 = vsub.f32 1.0, %v2546
        %v2548 = vmul.f32 %v2545, %v2547
        %v2549 = vadd.f32 %v2545, %v2548
        %vm2550 = vweird.f32 %v2387
        %vm2551 = vweird.f32 %v2545
        %vm2552 = vmor %vm2550, %vm2551
        %v2553 = vsel %vm2552, %v2545, %v2549
        %v2554 = vand.u32 2147483647, %v2387
        %vm2555 = vcmp.eq.f32.partialorder %v2554, 8.507059e+37
        %v2556 = vand.u32 %v2387, 2147483648
        %v2557 = vor.u32 1.1754944e-38, %v2556
        %v2558 = vsel %vm2555, %v2557, %v2553
        %v2559 = vmul.f32 1.0, %v2558
        %v2560 = vrcp.pop %v2388
        %v2561 = vmul.f32 %v2388, %v2560
        %v2562 = vsub.f32 1.0, %v2561
        %v2563 = vmul.f32 %v2560, %v2562
        %v2564 = vadd.f32 %v2560, %v2563
        %vm2565 = vweird.f32 %v2388
        %vm2566 = vweird.f32 %v2560
        %vm2567 = vmor %vm2565, %vm2566
        %v2568 = vsel %vm2567, %v2560, %v2564
        %v2569 = vand.u32 2147483647, %v2388
        %vm2570 = vcmp.eq.f32.partialorder %v2569, 8.507059e+37
        %v2571 = vand.u32 %v2388, 2147483648
        %v2572 = vor.u32 1.1754944e-38, %v2571
        %v2573 = vsel %vm2570, %v2572, %v2568
        %v2574 = vmul.f32 1.0, %v2573
        %v2575 = vrcp.pop %v2389
        %v2576 = vmul.f32 %v2389, %v2575
        %v2577 = vsub.f32 1.0, %v2576
        %v2578 = vmul.f32 %v2575, %v2577
        %v2579 = vadd.f32 %v2575, %v2578
        %vm2580 = vweird.f32 %v2389
        %vm2581 = vweird.f32 %v2575
        %vm2582 = vmor %vm2580, %vm2581
        %v2583 = vsel %vm2582, %v2575, %v2579
        %v2584 = vand.u32 2147483647, %v2389
        %vm2585 = vcmp.eq.f32.partialorder %v2584, 8.507059e+37
        %v2586 = vand.u32 %v2389, 2147483648
        %v2587 = vor.u32 1.1754944e-38, %v2586
        %v2588 = vsel %vm2585, %v2587, %v2583
        %v2589 = vmul.f32 1.0, %v2588
        %v2590 = vrcp.pop %v2390
        %v2591 = vmul.f32 %v2390, %v2590
        %v2592 = vsub.f32 1.0, %v2591
        %v2593 = vmul.f32 %v2590, %v2592
        %v2594 = vadd.f32 %v2590, %v2593
        %vm2595 = vweird.f32 %v2390
        %vm2596 = vweird.f32 %v2590
        %vm2597 = vmor %vm2595, %vm2596
        %v2598 = vsel %vm2597, %v2590, %v2594
        %v2599 = vand.u32 2147483647, %v2390
        %vm2600 = vcmp.eq.f32.partialorder %v2599, 8.507059e+37
        %v2601 = vand.u32 %v2390, 2147483648
        %v2602 = vor.u32 1.1754944e-38, %v2601
        %v2603 = vsel %vm2600, %v2602, %v2598
        %v2604 = vmul.f32 1.0, %v2603
        %v2605 = vrcp.pop %v2391
        %v2606 = vmul.f32 %v2391, %v2605
        %v2607 = vsub.f32 1.0, %v2606
        %v2608 = vmul.f32 %v2605, %v2607
        %v2609 = vadd.f32 %v2605, %v2608
        %vm2610 = vweird.f32 %v2391
        %vm2611 = vweird.f32 %v2605
        %vm2612 = vmor %vm2610, %vm2611
        %v2613 = vsel %vm2612, %v2605, %v2609
        %v2614 = vand.u32 2147483647, %v2391
        %vm2615 = vcmp.eq.f32.partialorder %v2614, 8.507059e+37
        %v2616 = vand.u32 %v2391, 2147483648
        %v2617 = vor.u32 1.1754944e-38, %v2616
        %v2618 = vsel %vm2615, %v2617, %v2613
        %v2619 = vmul.f32 1.0, %v2618
        %v2620 = vrcp.pop %v2392
        %v2621 = vmul.f32 %v2392, %v2620
        %v2622 = vsub.f32 1.0, %v2621
        %v2623 = vmul.f32 %v2620, %v2622
        %v2624 = vadd.f32 %v2620, %v2623
        %vm2625 = vweird.f32 %v2392
        %vm2626 = vweird.f32 %v2620
        %vm2627 = vmor %vm2625, %vm2626
        %v2628 = vsel %vm2627, %v2620, %v2624
        %v2629 = vand.u32 2147483647, %v2392
        %vm2630 = vcmp.eq.f32.partialorder %v2629, 8.507059e+37
        %v2631 = vand.u32 %v2392, 2147483648
        %v2632 = vor.u32 1.1754944e-38, %v2631
        %v2633 = vsel %vm2630, %v2632, %v2628
        %v2634 = vmul.f32 1.0, %v2633
        %v2635 = vrcp.pop %v2393
        %v2636 = vmul.f32 %v2393, %v2635
        %v2637 = vsub.f32 1.0, %v2636
        %v2638 = vmul.f32 %v2635, %v2637
        %v2639 = vadd.f32 %v2635, %v2638
        %vm2640 = vweird.f32 %v2393
        %vm2641 = vweird.f32 %v2635
        %vm2642 = vmor %vm2640, %vm2641
        %v2643 = vsel %vm2642, %v2635, %v2639
        %v2644 = vand.u32 2147483647, %v2393
        %vm2645 = vcmp.eq.f32.partialorder %v2644, 8.507059e+37
        %v2646 = vand.u32 %v2393, 2147483648
        %v2647 = vor.u32 1.1754944e-38, %v2646
        %v2648 = vsel %vm2645, %v2647, %v2643
        %v2649 = vmul.f32 1.0, %v2648
        %v2650 = vrcp.pop %v2394
        %v2651 = vmul.f32 %v2394, %v2650
        %v2652 = vsub.f32 1.0, %v2651
        %v2653 = vmul.f32 %v2650, %v2652
        %v2654 = vadd.f32 %v2650, %v2653
        %vm2655 = vweird.f32 %v2394
        %vm2656 = vweird.f32 %v2650
        %vm2657 = vmor %vm2655, %vm2656
        %v2658 = vsel %vm2657, %v2650, %v2654
        %v2659 = vand.u32 2147483647, %v2394
        %vm2660 = vcmp.eq.f32.partialorder %v2659, 8.507059e+37
        %v2661 = vand.u32 %v2394, 2147483648
        %v2662 = vor.u32 1.1754944e-38, %v2661
        %v2663 = vsel %vm2660, %v2662, %v2658
        %v2664 = vmul.f32 1.0, %v2663
        %v2665 = vrcp.pop %v2395
        %v2666 = vmul.f32 %v2395, %v2665
        %v2667 = vsub.f32 1.0, %v2666
        %v2668 = vmul.f32 %v2665, %v2667
        %v2669 = vadd.f32 %v2665, %v2668
        %vm2670 = vweird.f32 %v2395
        %vm2671 = vweird.f32 %v2665
        %vm2672 = vmor %vm2670, %vm2671
        %v2673 = vsel %vm2672, %v2665, %v2669
        %v2674 = vand.u32 2147483647, %v2395
        %vm2675 = vcmp.eq.f32.partialorder %v2674, 8.507059e+37
        %v2676 = vand.u32 %v2395, 2147483648
        %v2677 = vor.u32 1.1754944e-38, %v2676
        %v2678 = vsel %vm2675, %v2677, %v2673
        %v2679 = vmul.f32 1.0, %v2678
        %v2680 = vrcp.pop %v2396
        %v2681 = vmul.f32 %v2396, %v2680
        %v2682 = vsub.f32 1.0, %v2681
        %v2683 = vmul.f32 %v2680, %v2682
        %v2684 = vadd.f32 %v2680, %v2683
        %vm2685 = vweird.f32 %v2396
        %vm2686 = vweird.f32 %v2680
        %vm2687 = vmor %vm2685, %vm2686
        %v2688 = vsel %vm2687, %v2680, %v2684
        %v2689 = vand.u32 2147483647, %v2396
        %vm2690 = vcmp.eq.f32.partialorder %v2689, 8.507059e+37
        %v2691 = vand.u32 %v2396, 2147483648
        %v2692 = vor.u32 1.1754944e-38, %v2691
        %v2693 = vsel %vm2690, %v2692, %v2688
        %v2694 = vmul.f32 1.0, %v2693
        %v2695 = vrcp.pop %v2397
        %v2696 = vmul.f32 %v2397, %v2695
        %v2697 = vsub.f32 1.0, %v2696
        %v2698 = vmul.f32 %v2695, %v2697
        %v2699 = vadd.f32 %v2695, %v2698
        %vm2700 = vweird.f32 %v2397
        %vm2701 = vweird.f32 %v2695
        %vm2702 = vmor %vm2700, %vm2701
        %v2703 = vsel %vm2702, %v2695, %v2699
        %v2704 = vand.u32 2147483647, %v2397
        %vm2705 = vcmp.eq.f32.partialorder %v2704, 8.507059e+37
        %v2706 = vand.u32 %v2397, 2147483648
        %v2707 = vor.u32 1.1754944e-38, %v2706
        %v2708 = vsel %vm2705, %v2707, %v2703
        %v2709 = vmul.f32 1.0, %v2708
        %v2710 = vrcp.pop %v2398
        %v2711 = vmul.f32 %v2398, %v2710
        %v2712 = vsub.f32 1.0, %v2711
        %v2713 = vmul.f32 %v2710, %v2712
        %v2714 = vadd.f32 %v2710, %v2713
        %vm2715 = vweird.f32 %v2398
        %vm2716 = vweird.f32 %v2710
        %vm2717 = vmor %vm2715, %vm2716
        %v2718 = vsel %vm2717, %v2710, %v2714
        %v2719 = vand.u32 2147483647, %v2398
        %vm2720 = vcmp.eq.f32.partialorder %v2719, 8.507059e+37
        %v2721 = vand.u32 %v2398, 2147483648
        %v2722 = vor.u32 1.1754944e-38, %v2721
        %v2723 = vsel %vm2720, %v2722, %v2718
        %v2724 = vmul.f32 1.0, %v2723
        %v2725 = vrcp.pop %v2399
        %v2726 = vmul.f32 %v2399, %v2725
        %v2727 = vsub.f32 1.0, %v2726
        %v2728 = vmul.f32 %v2725, %v2727
        %v2729 = vadd.f32 %v2725, %v2728
        %vm2730 = vweird.f32 %v2399
        %vm2731 = vweird.f32 %v2725
        %vm2732 = vmor %vm2730, %vm2731
        %v2733 = vsel %vm2732, %v2725, %v2729
        %v2734 = vand.u32 2147483647, %v2399
        %vm2735 = vcmp.eq.f32.partialorder %v2734, 8.507059e+37
        %v2736 = vand.u32 %v2399, 2147483648
        %v2737 = vor.u32 1.1754944e-38, %v2736
        %v2738 = vsel %vm2735, %v2737, %v2733
        %v2739 = vmul.f32 1.0, %v2738
        %v2740 = vrcp.pop %v2400
        %v2741 = vmul.f32 %v2400, %v2740
        %v2742 = vsub.f32 1.0, %v2741
        %v2743 = vmul.f32 %v2740, %v2742
        %v2744 = vadd.f32 %v2740, %v2743
        %vm2745 = vweird.f32 %v2400
        %vm2746 = vweird.f32 %v2740
        %vm2747 = vmor %vm2745, %vm2746
        %v2748 = vsel %vm2747, %v2740, %v2744
        %v2749 = vand.u32 2147483647, %v2400
        %vm2750 = vcmp.eq.f32.partialorder %v2749, 8.507059e+37
        %v2751 = vand.u32 %v2400, 2147483648
        %v2752 = vor.u32 1.1754944e-38, %v2751
        %v2753 = vsel %vm2750, %v2752, %v2748
        %v2754 = vmul.f32 1.0, %v2753
        %v2755 = vrcp.pop %v2401
        %v2756 = vmul.f32 %v2401, %v2755
        %v2757 = vsub.f32 1.0, %v2756
        %v2758 = vmul.f32 %v2755, %v2757
        %v2759 = vadd.f32 %v2755, %v2758
        %vm2760 = vweird.f32 %v2401
        %vm2761 = vweird.f32 %v2755
        %vm2762 = vmor %vm2760, %vm2761
        %v2763 = vsel %vm2762, %v2755, %v2759
        %v2764 = vand.u32 2147483647, %v2401
        %vm2765 = vcmp.eq.f32.partialorder %v2764, 8.507059e+37
        %v2766 = vand.u32 %v2401, 2147483648
        %v2767 = vor.u32 1.1754944e-38, %v2766
        %v2768 = vsel %vm2765, %v2767, %v2763
        %v2769 = vmul.f32 1.0, %v2768
        %v2770 = vrcp.pop %v2402
        %v2771 = vmul.f32 %v2402, %v2770
        %v2772 = vsub.f32 1.0, %v2771
        %v2773 = vmul.f32 %v2770, %v2772
        %v2774 = vadd.f32 %v2770, %v2773
        %vm2775 = vweird.f32 %v2402
        %vm2776 = vweird.f32 %v2770
        %vm2777 = vmor %vm2775, %vm2776
        %v2778 = vsel %vm2777, %v2770, %v2774
        %v2779 = vand.u32 2147483647, %v2402
        %vm2780 = vcmp.eq.f32.partialorder %v2779, 8.507059e+37
        %v2781 = vand.u32 %v2402, 2147483648
        %v2782 = vor.u32 1.1754944e-38, %v2781
        %v2783 = vsel %vm2780, %v2782, %v2778
        %v2784 = vmul.f32 1.0, %v2783
        %v2785 = vrcp.pop %v2403
        %v2786 = vmul.f32 %v2403, %v2785
        %v2787 = vsub.f32 1.0, %v2786
        %v2788 = vmul.f32 %v2785, %v2787
        %v2789 = vadd.f32 %v2785, %v2788
        %vm2790 = vweird.f32 %v2403
        %vm2791 = vweird.f32 %v2785
        %vm2792 = vmor %vm2790, %vm2791
        %v2793 = vsel %vm2792, %v2785, %v2789
        %v2794 = vand.u32 2147483647, %v2403
        %vm2795 = vcmp.eq.f32.partialorder %v2794, 8.507059e+37
        %v2796 = vand.u32 %v2403, 2147483648
        %v2797 = vor.u32 1.1754944e-38, %v2796
        %v2798 = vsel %vm2795, %v2797, %v2793
        %v2799 = vmul.f32 1.0, %v2798
        %v2800 = vrcp.pop %v2404
        %v2801 = vmul.f32 %v2404, %v2800
        %v2802 = vsub.f32 1.0, %v2801
        %v2803 = vmul.f32 %v2800, %v2802
        %v2804 = vadd.f32 %v2800, %v2803
        %vm2805 = vweird.f32 %v2404
        %vm2806 = vweird.f32 %v2800
        %vm2807 = vmor %vm2805, %vm2806
        %v2808 = vsel %vm2807, %v2800, %v2804
        %v2809 = vand.u32 2147483647, %v2404
        %vm2810 = vcmp.eq.f32.partialorder %v2809, 8.507059e+37
        %v2811 = vand.u32 %v2404, 2147483648
        %v2812 = vor.u32 1.1754944e-38, %v2811
        %v2813 = vsel %vm2810, %v2812, %v2808
        %v2814 = vmul.f32 1.0, %v2813
        %v2815 = vrcp.pop %v2405
        %v2816 = vmul.f32 %v2405, %v2815
        %v2817 = vsub.f32 1.0, %v2816
        %v2818 = vmul.f32 %v2815, %v2817
        %v2819 = vadd.f32 %v2815, %v2818
        %vm2820 = vweird.f32 %v2405
        %vm2821 = vweird.f32 %v2815
        %vm2822 = vmor %vm2820, %vm2821
        %v2823 = vsel %vm2822, %v2815, %v2819
        %v2824 = vand.u32 2147483647, %v2405
        %vm2825 = vcmp.eq.f32.partialorder %v2824, 8.507059e+37
        %v2826 = vand.u32 %v2405, 2147483648
        %v2827 = vor.u32 1.1754944e-38, %v2826
        %v2828 = vsel %vm2825, %v2827, %v2823
        %v2829 = vmul.f32 1.0, %v2828
        %v2830 = vrcp.pop %v2406
        %v2831 = vmul.f32 %v2406, %v2830
        %v2832 = vsub.f32 1.0, %v2831
        %v2833 = vmul.f32 %v2830, %v2832
        %v2834 = vadd.f32 %v2830, %v2833
        %vm2835 = vweird.f32 %v2406
        %vm2836 = vweird.f32 %v2830
        %vm2837 = vmor %vm2835, %vm2836
        %v2838 = vsel %vm2837, %v2830, %v2834
        %v2839 = vand.u32 2147483647, %v2406
        %vm2840 = vcmp.eq.f32.partialorder %v2839, 8.507059e+37
        %v2841 = vand.u32 %v2406, 2147483648
        %v2842 = vor.u32 1.1754944e-38, %v2841
        %v2843 = vsel %vm2840, %v2842, %v2838
        %v2844 = vmul.f32 1.0, %v2843
        %v2845 = vrcp.pop %v2407
        %v2846 = vmul.f32 %v2407, %v2845
        %v2847 = vsub.f32 1.0, %v2846
        %v2848 = vmul.f32 %v2845, %v2847
        %v2849 = vadd.f32 %v2845, %v2848
        %vm2850 = vweird.f32 %v2407
        %vm2851 = vweird.f32 %v2845
        %vm2852 = vmor %vm2850, %vm2851
        %v2853 = vsel %vm2852, %v2845, %v2849
        %v2854 = vand.u32 2147483647, %v2407
        %vm2855 = vcmp.eq.f32.partialorder %v2854, 8.507059e+37
        %v2856 = vand.u32 %v2407, 2147483648
        %v2857 = vor.u32 1.1754944e-38, %v2856
        %v2858 = vsel %vm2855, %v2857, %v2853
        %v2859 = vmul.f32 1.0, %v2858
        %v2860 = vrcp.pop %v2408
        %v2861 = vmul.f32 %v2408, %v2860
        %v2862 = vsub.f32 1.0, %v2861
        %v2863 = vmul.f32 %v2860, %v2862
        %v2864 = vadd.f32 %v2860, %v2863
        %vm2865 = vweird.f32 %v2408
        %vm2866 = vweird.f32 %v2860
        %vm2867 = vmor %vm2865, %vm2866
        %v2868 = vsel %vm2867, %v2860, %v2864
        %v2869 = vand.u32 2147483647, %v2408
        %vm2870 = vcmp.eq.f32.partialorder %v2869, 8.507059e+37
        %v2871 = vand.u32 %v2408, 2147483648
        %v2872 = vor.u32 1.1754944e-38, %v2871
        %v2873 = vsel %vm2870, %v2872, %v2868
        %v2874 = vmul.f32 1.0, %v2873
        %v2875 = vrcp.pop %v2409
        %v2876 = vmul.f32 %v2409, %v2875
        %v2877 = vsub.f32 1.0, %v2876
        %v2878 = vmul.f32 %v2875, %v2877
        %v2879 = vadd.f32 %v2875, %v2878
        %vm2880 = vweird.f32 %v2409
        %vm2881 = vweird.f32 %v2875
        %vm2882 = vmor %vm2880, %vm2881
        %v2883 = vsel %vm2882, %v2875, %v2879
        %v2884 = vand.u32 2147483647, %v2409
        %vm2885 = vcmp.eq.f32.partialorder %v2884, 8.507059e+37
        %v2886 = vand.u32 %v2409, 2147483648
        %v2887 = vor.u32 1.1754944e-38, %v2886
        %v2888 = vsel %vm2885, %v2887, %v2883
        %v2889 = vmul.f32 1.0, %v2888
        %v2922 = vrot.slane %v2424, 4
        %v2923 = vrot.slane %v2439, 4
        %v2924 = vrot.slane %v2454, 4
        %v2925 = vrot.slane %v2469, 4
        %v2926 = vrot.slane %v2484, 4
        %v2927 = vrot.slane %v2499, 4
        %v2928 = vrot.slane %v2514, 4
        %v2929 = vrot.slane %v2529, 4
        %v2930 = vrot.slane %v2544, 4
        %v2931 = vrot.slane %v2559, 4
        %v2932 = vrot.slane %v2574, 4
        %v2933 = vrot.slane %v2589, 4
        %v2934 = vrot.slane %v2604, 4
        %v2935 = vrot.slane %v2619, 4
        %v2936 = vrot.slane %v2634, 4
        %v2937 = vrot.slane %v2649, 4
        %v2938 = vrot.slane %v2664, 4
        %v2939 = vrot.slane %v2679, 4
        %v2940 = vrot.slane %v2694, 4
        %v2941 = vrot.slane %v2709, 4
        %v2942 = vrot.slane %v2724, 4
        %v2943 = vrot.slane %v2739, 4
        %v2944 = vrot.slane %v2754, 4
        %v2945 = vrot.slane %v2769, 4
        %v2946 = vrot.slane %v2784, 4
        %v2947 = vrot.slane %v2799, 4
        %v2948 = vrot.slane %v2814, 4
        %v2949 = vrot.slane %v2829, 4
        %v2950 = vrot.slane %v2844, 4
        %v2951 = vrot.slane %v2859, 4
        %v2952 = vrot.slane %v2874, 4
        %v2953 = vrot.slane %v2889, 4
        %v2986 = vmul.f32 %v2250, %v2922
        %v2987 = vmul.f32 %v2251, %v2923
        %v2988 = vmul.f32 %v2252, %v2924
        %v2989 = vmul.f32 %v2253, %v2925
        %v2990 = vmul.f32 %v2254, %v2926
        %v2991 = vmul.f32 %v2255, %v2927
        %v2992 = vmul.f32 %v2256, %v2928
        %v2993 = vmul.f32 %v2257, %v2929
        %v2994 = vmul.f32 %v2258, %v2930
        %v2995 = vmul.f32 %v2259, %v2931
        %v2996 = vmul.f32 %v2260, %v2932
        %v2997 = vmul.f32 %v2261, %v2933
        %v2998 = vmul.f32 %v2262, %v2934
        %v2999 = vmul.f32 %v2263, %v2935
        %v3000 = vmul.f32 %v2264, %v2936
        %v3001 = vmul.f32 %v2265, %v2937
        %v3002 = vmul.f32 %v2266, %v2938
        %v3003 = vmul.f32 %v2267, %v2939
        %v3004 = vmul.f32 %v2268, %v2940
        %v3005 = vmul.f32 %v2269, %v2941
        %v3006 = vmul.f32 %v2270, %v2942
        %v3007 = vmul.f32 %v2271, %v2943
        %v3008 = vmul.f32 %v2272, %v2944
        %v3009 = vmul.f32 %v2273, %v2945
        %v3010 = vmul.f32 %v2274, %v2946
        %v3011 = vmul.f32 %v2275, %v2947
        %v3012 = vmul.f32 %v2276, %v2948
        %v3013 = vmul.f32 %v2277, %v2949
        %v3014 = vmul.f32 %v2278, %v2950
        %v3015 = vmul.f32 %v2279, %v2951
        %v3016 = vmul.f32 %v2280, %v2952
        %v3017 = vmul.f32 %v2281, %v2953
        %v3050 = vrot.slane %v2987, 4
        %v3051 = vrot.slane %v2989, 4
        %v3052 = vrot.slane %v2991, 4
        %v3053 = vrot.slane %v2993, 4
        %v3054 = vrot.slane %v2995, 4
        %v3055 = vrot.slane %v2997, 4
        %v3056 = vrot.slane %v2999, 4
        %v3057 = vrot.slane %v3001, 4
        %v3058 = vrot.slane %v3003, 4
        %v3059 = vrot.slane %v3005, 4
        %v3060 = vrot.slane %v3007, 4
        %v3061 = vrot.slane %v3009, 4
        %v3062 = vrot.slane %v3011, 4
        %v3063 = vrot.slane %v3013, 4
        %v3064 = vrot.slane %v3015, 4
        %v3065 = vrot.slane %v3017, 4
        %v3066 = vsel %vm1372, %v2986, %v3050
        %v3067 = vsel %vm1372, %v2988, %v3051
        %v3068 = vsel %vm1372, %v2990, %v3052
        %v3069 = vsel %vm1372, %v2992, %v3053
        %v3070 = vsel %vm1372, %v2994, %v3054
        %v3071 = vsel %vm1372, %v2996, %v3055
        %v3072 = vsel %vm1372, %v2998, %v3056
        %v3073 = vsel %vm1372, %v3000, %v3057
        %v3074 = vsel %vm1372, %v3002, %v3058
        %v3075 = vsel %vm1372, %v3004, %v3059
        %v3076 = vsel %vm1372, %v3006, %v3060
        %v3077 = vsel %vm1372, %v3008, %v3061
        %v3078 = vsel %vm1372, %v3010, %v3062
        %v3079 = vsel %vm1372, %v3012, %v3063
        %v3080 = vsel %vm1372, %v3014, %v3064
        %v3081 = vsel %vm1372, %v3016, %v3065
        %3098 = vst [vmem:[%s258] sm:$0xff] %v3066
        %3099 = vst [vmem:[%s258 + $0x8] sm:$0xff] %v3067
        %3100 = vst [vmem:[%s258 + $0x10] sm:$0xff] %v3068
        %3101 = vst [vmem:[%s258 + $0x18] sm:$0xff] %v3069
        %3102 = vst [vmem:[%s258 + $0x20] sm:$0xff] %v3070
        %3103 = vst [vmem:[%s258 + $0x28] sm:$0xff] %v3071
        %3104 = vst [vmem:[%s258 + $0x30] sm:$0xff] %v3072
        %3105 = vst [vmem:[%s258 + $0x38] sm:$0xff] %v3073
        %3106 = vst [vmem:[%s258 + $0x40] sm:$0xff] %v3074
        %3107 = vst [vmem:[%s258 + $0x48] sm:$0xff] %v3075
        %3108 = vst [vmem:[%s258 + $0x50] sm:$0xff] %v3076
        %3109 = vst [vmem:[%s258 + $0x58] sm:$0xff] %v3077
        %3110 = vst [vmem:[%s258 + $0x60] sm:$0xff] %v3078
        %3111 = vst [vmem:[%s258 + $0x68] sm:$0xff] %v3079
        %3112 = vst [vmem:[%s258 + $0x70] sm:$0xff] %v3080
        %3113 = vst [vmem:[%s258 + $0x78] sm:$0xff] %v3081
        %p3114 = scmp.lt.s32.totalorder %s18, 1
        %s3115 = scalar_select %p3114, %s18, 1
        %s3116 = smul.addr %s3115, 32
        %s3117 = smul.addr %s3116, 4
        %s3118 = scalar_lea.vmem %s5, %s3117
        // Predicated region
        $region49: #{gate_deconv_forward.1} parent=39 // pred_check
          %p3119 = pneg %p146
        $region50: #{gate_deconv_forward.1} parent=39 // pred_check_branch
          %3121 = sbr.rel (%p3119) target = $region52
        $region51: #{gate_deconv_forward.1} parent=39 // pred_region
          _
        $region52: #{gate_deconv_forward.1} parent=39 // pred_fallthru
          _
      $region40: #{gate_deconv_forward.1} parent=5 // pred_fallthru
        _
      %p3122 = scmp.le.s32.totalorder 2, %s13
      // Predicated region
      $region53: #{gate_deconv_forward.1} parent=5 // pred_check
        %p3123 = pneg %p3122
      $region54: #{gate_deconv_forward.1} parent=5 // pred_check_branch
        %3125 = sbr.rel (%p3123) target = $region56
      $region55: #{gate_deconv_forward.1} parent=5 // pred_region
        %s3126 = ssub.s32 %s13, 2
        // Predicated region
        $region57: #{gate_deconv_forward.1} parent=55 // pred_check
          %p3127 = pneg %p152
        $region58: #{gate_deconv_forward.1} parent=55 // pred_check_branch
          %3129 = sbr.rel (%p3127) target = $region60
        $region59: #{gate_deconv_forward.1} parent=55 // pred_region
          %p3130 = scmp.lt.s32.totalorder %s19, 1
          %s3131 = scalar_select %p3130, %s19, 1
          %s3132 = smul.addr %s3131, 32
          %s3133 = smul.addr %s3132, 4
          %s3134 = scalar_lea.vmem %s5, %s3133
        $region60: #{gate_deconv_forward.1} parent=55 // pred_fallthru
          _
      $region56: #{gate_deconv_forward.1} parent=5 // pred_fallthru
        _
    $region6: #{gate_deconv_forward.1} parent=1 // loop_footer
      %s17 = sadd.s32 1, %s13
    $region7: #{gate_deconv_forward.1} parent=1 // loop_footer_branch
      %12 = sbr.rel target = $region3
    $region8: #{gate_deconv_forward.1} parent=1 // loop_exit
      _
    %3135 = vsyncpa [#allocation3], 1
    %s3136 = scalar_lea.sflag [#allocation3], 1
    %3137 = vsyncpa %s3136, 1
    %3138 = vsyncpa [#allocation5], 1

</llo_original>
